<compile_context>
chip_gen: v5e
topology: v5e:2x2
jax: 0.10.0
libtpu: 0.0.40
codegen_flags: <defaults>
</compile_context>

<pallas_src>
import numpy as np
import jax
import jax.numpy as jnp
from jax.experimental import pallas as pl
from jax.experimental.pallas import tpu as pltpu

_LOG_2PI = float(np.log(2.0 * np.pi))


def _split2d_kernel(w_ref, b_ref, scale_ref, z1p_ref, z2_ref, logp_ref):
    """Fused Conv2dZeros prior + GaussianDiag.logp.

    w_ref:     (Cout*Cin*9,)      f32 SMEM  -- 3x3 conv weights, OIHW flattened
    b_ref:     (Cout,)            f32 SMEM  -- conv bias
    scale_ref: (Cout,)            f32 SMEM  -- exp(logscale_factor * logs_param)
    z1p_ref:   (N, Cin, H+2, W+2) f32 VMEM  -- zero-padded first channel half
    z2_ref:    (N, Cin, H, W)     f32 VMEM  -- second channel half
    logp_ref:  (N, 1)             f32 VMEM  -- per-sample sum of log-likelihood
    """
    N, Cin, Hp, Wp = z1p_ref.shape
    H, W = Hp - 2, Wp - 2

    # 3x3 shifted "taps" of padded z1: one (N, H, W) slab per (cin, dy, dx),
    # loaded once and reused for every output channel.
    taps = []
    for ci in range(Cin):
        per_ci = []
        for dy in range(3):
            for dx in range(3):
                per_ci.append(z1p_ref[:, ci, dy:dy + H, dx:dx + W])
        taps.append(per_ci)

    total = jnp.zeros((N, 1), jnp.float32)
    for c2 in range(Cin):                        # z2 / (mean, logs) channel index
        h_pair = []
        for co in (2 * c2, 2 * c2 + 1):          # 'cross' split: even->mean, odd->logs
            acc = jnp.zeros((N, H, W), jnp.float32)
            for ci in range(Cin):
                for t in range(9):
                    dy, dx = t // 3, t % 3
                    widx = ((co * Cin + ci) * 3 + dy) * 3 + dx
                    acc = acc + w_ref[widx] * taps[ci][t]
            h_pair.append((acc + b_ref[co]) * scale_ref[co])
        mean_c, logs_c = h_pair

        z2_c = z2_ref[:, c2]                                    # (N, H, W)
        ll = -0.5 * (2.0 * logs_c
                     + (z2_c - mean_c) ** 2 / jnp.exp(2.0 * logs_c)
                     + _LOG_2PI)
        # Per-sample reduction: reduce lanes (W), then the remaining axis (H).
        row = jnp.sum(ll, axis=2)                               # (N, H)
        total = total + jnp.sum(row, axis=1, keepdims=True)     # (N, 1)

    logp_ref[...] = total


def split2d_forward(x, weight, bias, logs_param, logdet=0.0, logscale_factor=3.0):
    """Pallas implementation of Split2d.forward(input, logdet, reverse=False)."""
    N, C, H, W = x.shape
    assert C % 2 == 0
    Cz = C // 2
    assert weight.shape == (C, Cz, 3, 3)

    z1 = x[:, :Cz]          # returned as-is (pure slice, no kernel copy needed)
    z2 = x[:, Cz:]

    # 'same' padding for the 3x3 / stride-1 conv, done once outside the kernel.
    z1p = jnp.pad(z1.astype(jnp.float32), ((0, 0), (0, 0), (1, 1), (1, 1)))
    w_flat = weight.reshape(-1).astype(jnp.float32)
    b = bias.reshape(-1).astype(jnp.float32)
    scale = jnp.exp(logs_param.reshape(-1).astype(jnp.float32) * logscale_factor)

    logp = pl.pallas_call(
        _split2d_kernel,
        out_shape=jax.ShapeDtypeStruct((N, 1), jnp.float32),
        in_specs=[
            pl.BlockSpec(memory_space=pltpu.MemorySpace.SMEM),   # conv weights
            pl.BlockSpec(memory_space=pltpu.MemorySpace.SMEM),   # conv bias
            pl.BlockSpec(memory_space=pltpu.MemorySpace.SMEM),   # exp(3*logs) scales
            pl.BlockSpec(memory_space=pltpu.MemorySpace.VMEM),   # padded z1
            pl.BlockSpec(memory_space=pltpu.MemorySpace.VMEM),   # z2
        ],
        out_specs=pl.BlockSpec(memory_space=pltpu.MemorySpace.VMEM),
    )(w_flat, b, scale, z1p, z2.astype(jnp.float32))

    return z1, logp[:, 0] + jnp.asarray(logdet, dtype=jnp.float32)


def split2d_forward_ref(x, weight, bias, logs_param, logdet=0.0, logscale_factor=3.0):
    """Pure-JAX reference (mirrors the PyTorch module math)."""
    N, C, H, W = x.shape
    Cz = C // 2
    z1, z2 = x[:, :Cz], x[:, Cz:]
    h = jax.lax.conv_general_dilated(
        z1.astype(jnp.float32), weight.astype(jnp.float32),
        window_strides=(1, 1), padding=((1, 1), (1, 1)),
        dimension_numbers=("NCHW", "OIHW", "NCHW"))
    h = (h + bias.reshape(1, -1, 1, 1)) * jnp.exp(
        logs_param.reshape(1, -1, 1, 1) * logscale_factor)
    mean, logs = h[:, 0::2], h[:, 1::2]
    ll = -0.5 * (logs * 2.0 + (z2 - mean) ** 2 / jnp.exp(logs * 2.0) + _LOG_2PI)
    return z1, jnp.sum(ll, axis=(1, 2, 3)) + logdet


class Split2d:
    """JAX/Pallas port of the PyTorch Split2d module (forward / reverse=False)."""

    def __init__(self, num_channels: int):
        assert num_channels % 2 == 0
        cz = num_channels // 2
        # Conv2dZeros: weight, bias and logs are all initialized to zero.
        self.weight = jnp.zeros((num_channels, cz, 3, 3), jnp.float32)
        self.bias = jnp.zeros((num_channels,), jnp.float32)
        self.logs = jnp.zeros((num_channels,), jnp.float32)
        self.logscale_factor = 3.0

    def __call__(self, x, logdet=0.0, reverse=False, eps_std=None):
        if reverse:
            # TODO(synk): reverse path needs GaussianDiag.sample (torch.normal RNG); not implemented.
            raise NotImplementedError("Split2d reverse path not implemented")
        return split2d_forward(x, self.weight, self.bias, self.logs,
                               logdet=logdet, logscale_factor=self.logscale_factor)


if __name__ == "__main__":
    key = jax.random.PRNGKey(0)
    N, C, H, W = 2, 4, 16, 16
    k1, k2, k3, k4 = jax.random.split(key, 4)
    x = jax.random.normal(k1, (N, C, H, W), dtype=jnp.float32)

    mod = Split2d(num_channels=C)

    # 1) default (zero-initialized Conv2dZeros) parameters
    z1, logdet = jax.block_until_ready(mod(x, logdet=0.0, reverse=False))
    z1_ref, logdet_ref = split2d_forward_ref(x, mod.weight, mod.bias, mod.logs, 0.0)
    np.testing.assert_allclose(np.asarray(z1), np.asarray(z1_ref), rtol=0, atol=0)
    np.testing.assert_allclose(np.asarray(logdet), np.asarray(logdet_ref),
                               rtol=2e-5, atol=1e-3)

    # 2) non-trivial parameters to exercise the conv-prior path
    mod.weight = 0.05 * jax.random.normal(k2, mod.weight.shape, dtype=jnp.float32)
    mod.bias = 0.10 * jax.random.normal(k3, mod.bias.shape, dtype=jnp.float32)
    mod.logs = 0.10 * jax.random.normal(k4, mod.logs.shape, dtype=jnp.float32)

    z1b, logdet_b = jax.block_until_ready(mod(x, logdet=1.5, reverse=False))
    z1b_ref, logdet_b_ref = split2d_forward_ref(x, mod.weight, mod.bias, mod.logs, 1.5)
    np.testing.assert_allclose(np.asarray(z1b), np.asarray(z1b_ref), rtol=0, atol=0)
    np.testing.assert_allclose(np.asarray(logdet_b), np.asarray(logdet_b_ref),
                               rtol=2e-5, atol=1e-3)

    print("KERNEL_OK")
</pallas_src>

<mosaic_0001>
module attributes {stable_mosaic.version = 11 : i64} {
  func.func @_split2d_kernel(%arg0: memref<72xf32, #tpu.memory_space<smem>>, %arg1: memref<4xf32, #tpu.memory_space<smem>>, %arg2: memref<4xf32, #tpu.memory_space<smem>>, %arg3: memref<2x2x18x18xf32, #tpu.memory_space<vmem>>, %arg4: memref<2x2x16x16xf32, #tpu.memory_space<vmem>>, %arg5: memref<2x1xf32, #tpu.memory_space<vmem>>) attributes {dimension_semantics = [], scalar_prefetch = 0 : i64, scratch_operands = 0 : i64, tpu.core_type = #tpu.core_type<tc>} {
    %c0 = arith.constant 0 : index
    %c0_0 = arith.constant 0 : index
    %c0_1 = arith.constant 0 : index
    %c0_2 = arith.constant 0 : index
    %0 = vector.load %arg3[%c0, %c0_0, %c0_1, %c0_2] : memref<2x2x18x18xf32, #tpu.memory_space<vmem>>, vector<2x1x16x16xf32>
    %1 = vector.shape_cast %0 : vector<2x1x16x16xf32> to vector<2x16x16xf32>
    %c0_3 = arith.constant 0 : index
    %c0_4 = arith.constant 0 : index
    %c0_5 = arith.constant 0 : index
    %c1 = arith.constant 1 : index
    %2 = vector.load %arg3[%c0_3, %c0_4, %c0_5, %c1] : memref<2x2x18x18xf32, #tpu.memory_space<vmem>>, vector<2x1x16x16xf32>
    %3 = vector.shape_cast %2 : vector<2x1x16x16xf32> to vector<2x16x16xf32>
    %c0_6 = arith.constant 0 : index
    %c0_7 = arith.constant 0 : index
    %c0_8 = arith.constant 0 : index
    %c2 = arith.constant 2 : index
    %4 = vector.load %arg3[%c0_6, %c0_7, %c0_8, %c2] : memref<2x2x18x18xf32, #tpu.memory_space<vmem>>, vector<2x1x16x16xf32>
    %5 = vector.shape_cast %4 : vector<2x1x16x16xf32> to vector<2x16x16xf32>
    %c0_9 = arith.constant 0 : index
    %c0_10 = arith.constant 0 : index
    %c1_11 = arith.constant 1 : index
    %c0_12 = arith.constant 0 : index
    %6 = vector.load %arg3[%c0_9, %c0_10, %c1_11, %c0_12] : memref<2x2x18x18xf32, #tpu.memory_space<vmem>>, vector<2x1x16x16xf32>
    %7 = vector.shape_cast %6 : vector<2x1x16x16xf32> to vector<2x16x16xf32>
    %c0_13 = arith.constant 0 : index
    %c0_14 = arith.constant 0 : index
    %c1_15 = arith.constant 1 : index
    %c1_16 = arith.constant 1 : index
    %8 = vector.load %arg3[%c0_13, %c0_14, %c1_15, %c1_16] : memref<2x2x18x18xf32, #tpu.memory_space<vmem>>, vector<2x1x16x16xf32>
    %9 = vector.shape_cast %8 : vector<2x1x16x16xf32> to vector<2x16x16xf32>
    %c0_17 = arith.constant 0 : index
    %c0_18 = arith.constant 0 : index
    %c1_19 = arith.constant 1 : index
    %c2_20 = arith.constant 2 : index
    %10 = vector.load %arg3[%c0_17, %c0_18, %c1_19, %c2_20] : memref<2x2x18x18xf32, #tpu.memory_space<vmem>>, vector<2x1x16x16xf32>
    %11 = vector.shape_cast %10 : vector<2x1x16x16xf32> to vector<2x16x16xf32>
    %c0_21 = arith.constant 0 : index
    %c0_22 = arith.constant 0 : index
    %c2_23 = arith.constant 2 : index
    %c0_24 = arith.constant 0 : index
    %12 = vector.load %arg3[%c0_21, %c0_22, %c2_23, %c0_24] : memref<2x2x18x18xf32, #tpu.memory_space<vmem>>, vector<2x1x16x16xf32>
    %13 = vector.shape_cast %12 : vector<2x1x16x16xf32> to vector<2x16x16xf32>
    %c0_25 = arith.constant 0 : index
    %c0_26 = arith.constant 0 : index
    %c2_27 = arith.constant 2 : index
    %c1_28 = arith.constant 1 : index
    %14 = vector.load %arg3[%c0_25, %c0_26, %c2_27, %c1_28] : memref<2x2x18x18xf32, #tpu.memory_space<vmem>>, vector<2x1x16x16xf32>
    %15 = vector.shape_cast %14 : vector<2x1x16x16xf32> to vector<2x16x16xf32>
    %c0_29 = arith.constant 0 : index
    %c0_30 = arith.constant 0 : index
    %c2_31 = arith.constant 2 : index
    %c2_32 = arith.constant 2 : index
    %16 = vector.load %arg3[%c0_29, %c0_30, %c2_31, %c2_32] : memref<2x2x18x18xf32, #tpu.memory_space<vmem>>, vector<2x1x16x16xf32>
    %17 = vector.shape_cast %16 : vector<2x1x16x16xf32> to vector<2x16x16xf32>
    %c0_33 = arith.constant 0 : index
    %c1_34 = arith.constant 1 : index
    %c0_35 = arith.constant 0 : index
    %c0_36 = arith.constant 0 : index
    %18 = vector.load %arg3[%c0_33, %c1_34, %c0_35, %c0_36] : memref<2x2x18x18xf32, #tpu.memory_space<vmem>>, vector<2x1x16x16xf32>
    %19 = vector.shape_cast %18 : vector<2x1x16x16xf32> to vector<2x16x16xf32>
    %c0_37 = arith.constant 0 : index
    %c1_38 = arith.constant 1 : index
    %c0_39 = arith.constant 0 : index
    %c1_40 = arith.constant 1 : index
    %20 = vector.load %arg3[%c0_37, %c1_38, %c0_39, %c1_40] : memref<2x2x18x18xf32, #tpu.memory_space<vmem>>, vector<2x1x16x16xf32>
    %21 = vector.shape_cast %20 : vector<2x1x16x16xf32> to vector<2x16x16xf32>
    %c0_41 = arith.constant 0 : index
    %c1_42 = arith.constant 1 : index
    %c0_43 = arith.constant 0 : index
    %c2_44 = arith.constant 2 : index
    %22 = vector.load %arg3[%c0_41, %c1_42, %c0_43, %c2_44] : memref<2x2x18x18xf32, #tpu.memory_space<vmem>>, vector<2x1x16x16xf32>
    %23 = vector.shape_cast %22 : vector<2x1x16x16xf32> to vector<2x16x16xf32>
    %c0_45 = arith.constant 0 : index
    %c1_46 = arith.constant 1 : index
    %c1_47 = arith.constant 1 : index
    %c0_48 = arith.constant 0 : index
    %24 = vector.load %arg3[%c0_45, %c1_46, %c1_47, %c0_48] : memref<2x2x18x18xf32, #tpu.memory_space<vmem>>, vector<2x1x16x16xf32>
    %25 = vector.shape_cast %24 : vector<2x1x16x16xf32> to vector<2x16x16xf32>
    %c0_49 = arith.constant 0 : index
    %c1_50 = arith.constant 1 : index
    %c1_51 = arith.constant 1 : index
    %c1_52 = arith.constant 1 : index
    %26 = vector.load %arg3[%c0_49, %c1_50, %c1_51, %c1_52] : memref<2x2x18x18xf32, #tpu.memory_space<vmem>>, vector<2x1x16x16xf32>
    %27 = vector.shape_cast %26 : vector<2x1x16x16xf32> to vector<2x16x16xf32>
    %c0_53 = arith.constant 0 : index
    %c1_54 = arith.constant 1 : index
    %c1_55 = arith.constant 1 : index
    %c2_56 = arith.constant 2 : index
    %28 = vector.load %arg3[%c0_53, %c1_54, %c1_55, %c2_56] : memref<2x2x18x18xf32, #tpu.memory_space<vmem>>, vector<2x1x16x16xf32>
    %29 = vector.shape_cast %28 : vector<2x1x16x16xf32> to vector<2x16x16xf32>
    %c0_57 = arith.constant 0 : index
    %c1_58 = arith.constant 1 : index
    %c2_59 = arith.constant 2 : index
    %c0_60 = arith.constant 0 : index
    %30 = vector.load %arg3[%c0_57, %c1_58, %c2_59, %c0_60] : memref<2x2x18x18xf32, #tpu.memory_space<vmem>>, vector<2x1x16x16xf32>
    %31 = vector.shape_cast %30 : vector<2x1x16x16xf32> to vector<2x16x16xf32>
    %c0_61 = arith.constant 0 : index
    %c1_62 = arith.constant 1 : index
    %c2_63 = arith.constant 2 : index
    %c1_64 = arith.constant 1 : index
    %32 = vector.load %arg3[%c0_61, %c1_62, %c2_63, %c1_64] : memref<2x2x18x18xf32, #tpu.memory_space<vmem>>, vector<2x1x16x16xf32>
    %33 = vector.shape_cast %32 : vector<2x1x16x16xf32> to vector<2x16x16xf32>
    %c0_65 = arith.constant 0 : index
    %c1_66 = arith.constant 1 : index
    %c2_67 = arith.constant 2 : index
    %c2_68 = arith.constant 2 : index
    %34 = vector.load %arg3[%c0_65, %c1_66, %c2_67, %c2_68] : memref<2x2x18x18xf32, #tpu.memory_space<vmem>>, vector<2x1x16x16xf32>
    %35 = vector.shape_cast %34 : vector<2x1x16x16xf32> to vector<2x16x16xf32>
    %cst = arith.constant 0.000000e+00 : f32
    %36 = vector.broadcast %cst : f32 to vector<2x1xf32>
    %cst_69 = arith.constant 0.000000e+00 : f32
    %37 = vector.broadcast %cst_69 : f32 to vector<2x16x16xf32>
    %c0_70 = arith.constant 0 : index
    %38 = memref.load %arg0[%c0_70] : memref<72xf32, #tpu.memory_space<smem>>
    %39 = vector.broadcast %38 : f32 to vector<2x16x16xf32>
    %40 = arith.mulf %39, %1 : vector<2x16x16xf32>
    %41 = arith.addf %37, %40 : vector<2x16x16xf32>
    %c1_71 = arith.constant 1 : index
    %42 = memref.load %arg0[%c1_71] : memref<72xf32, #tpu.memory_space<smem>>
    %43 = vector.broadcast %42 : f32 to vector<2x16x16xf32>
    %44 = arith.mulf %43, %3 : vector<2x16x16xf32>
    %45 = arith.addf %41, %44 : vector<2x16x16xf32>
    %c2_72 = arith.constant 2 : index
    %46 = memref.load %arg0[%c2_72] : memref<72xf32, #tpu.memory_space<smem>>
    %47 = vector.broadcast %46 : f32 to vector<2x16x16xf32>
    %48 = arith.mulf %47, %5 : vector<2x16x16xf32>
    %49 = arith.addf %45, %48 : vector<2x16x16xf32>
    %c3 = arith.constant 3 : index
    %50 = memref.load %arg0[%c3] : memref<72xf32, #tpu.memory_space<smem>>
    %51 = vector.broadcast %50 : f32 to vector<2x16x16xf32>
    %52 = arith.mulf %51, %7 : vector<2x16x16xf32>
    %53 = arith.addf %49, %52 : vector<2x16x16xf32>
    %c4 = arith.constant 4 : index
    %54 = memref.load %arg0[%c4] : memref<72xf32, #tpu.memory_space<smem>>
    %55 = vector.broadcast %54 : f32 to vector<2x16x16xf32>
    %56 = arith.mulf %55, %9 : vector<2x16x16xf32>
    %57 = arith.addf %53, %56 : vector<2x16x16xf32>
    %c5 = arith.constant 5 : index
    %58 = memref.load %arg0[%c5] : memref<72xf32, #tpu.memory_space<smem>>
    %59 = vector.broadcast %58 : f32 to vector<2x16x16xf32>
    %60 = arith.mulf %59, %11 : vector<2x16x16xf32>
    %61 = arith.addf %57, %60 : vector<2x16x16xf32>
    %c6 = arith.constant 6 : index
    %62 = memref.load %arg0[%c6] : memref<72xf32, #tpu.memory_space<smem>>
    %63 = vector.broadcast %62 : f32 to vector<2x16x16xf32>
    %64 = arith.mulf %63, %13 : vector<2x16x16xf32>
    %65 = arith.addf %61, %64 : vector<2x16x16xf32>
    %c7 = arith.constant 7 : index
    %66 = memref.load %arg0[%c7] : memref<72xf32, #tpu.memory_space<smem>>
    %67 = vector.broadcast %66 : f32 to vector<2x16x16xf32>
    %68 = arith.mulf %67, %15 : vector<2x16x16xf32>
    %69 = arith.addf %65, %68 : vector<2x16x16xf32>
    %c8 = arith.constant 8 : index
    %70 = memref.load %arg0[%c8] : memref<72xf32, #tpu.memory_space<smem>>
    %71 = vector.broadcast %70 : f32 to vector<2x16x16xf32>
    %72 = arith.mulf %71, %17 : vector<2x16x16xf32>
    %73 = arith.addf %69, %72 : vector<2x16x16xf32>
    %c9 = arith.constant 9 : index
    %74 = memref.load %arg0[%c9] : memref<72xf32, #tpu.memory_space<smem>>
    %75 = vector.broadcast %74 : f32 to vector<2x16x16xf32>
    %76 = arith.mulf %75, %19 : vector<2x16x16xf32>
    %77 = arith.addf %73, %76 : vector<2x16x16xf32>
    %c10 = arith.constant 10 : index
    %78 = memref.load %arg0[%c10] : memref<72xf32, #tpu.memory_space<smem>>
    %79 = vector.broadcast %78 : f32 to vector<2x16x16xf32>
    %80 = arith.mulf %79, %21 : vector<2x16x16xf32>
    %81 = arith.addf %77, %80 : vector<2x16x16xf32>
    %c11 = arith.constant 11 : index
    %82 = memref.load %arg0[%c11] : memref<72xf32, #tpu.memory_space<smem>>
    %83 = vector.broadcast %82 : f32 to vector<2x16x16xf32>
    %84 = arith.mulf %83, %23 : vector<2x16x16xf32>
    %85 = arith.addf %81, %84 : vector<2x16x16xf32>
    %c12 = arith.constant 12 : index
    %86 = memref.load %arg0[%c12] : memref<72xf32, #tpu.memory_space<smem>>
    %87 = vector.broadcast %86 : f32 to vector<2x16x16xf32>
    %88 = arith.mulf %87, %25 : vector<2x16x16xf32>
    %89 = arith.addf %85, %88 : vector<2x16x16xf32>
    %c13 = arith.constant 13 : index
    %90 = memref.load %arg0[%c13] : memref<72xf32, #tpu.memory_space<smem>>
    %91 = vector.broadcast %90 : f32 to vector<2x16x16xf32>
    %92 = arith.mulf %91, %27 : vector<2x16x16xf32>
    %93 = arith.addf %89, %92 : vector<2x16x16xf32>
    %c14 = arith.constant 14 : index
    %94 = memref.load %arg0[%c14] : memref<72xf32, #tpu.memory_space<smem>>
    %95 = vector.broadcast %94 : f32 to vector<2x16x16xf32>
    %96 = arith.mulf %95, %29 : vector<2x16x16xf32>
    %97 = arith.addf %93, %96 : vector<2x16x16xf32>
    %c15 = arith.constant 15 : index
    %98 = memref.load %arg0[%c15] : memref<72xf32, #tpu.memory_space<smem>>
    %99 = vector.broadcast %98 : f32 to vector<2x16x16xf32>
    %100 = arith.mulf %99, %31 : vector<2x16x16xf32>
    %101 = arith.addf %97, %100 : vector<2x16x16xf32>
    %c16 = arith.constant 16 : index
    %102 = memref.load %arg0[%c16] : memref<72xf32, #tpu.memory_space<smem>>
    %103 = vector.broadcast %102 : f32 to vector<2x16x16xf32>
    %104 = arith.mulf %103, %33 : vector<2x16x16xf32>
    %105 = arith.addf %101, %104 : vector<2x16x16xf32>
    %c17 = arith.constant 17 : index
    %106 = memref.load %arg0[%c17] : memref<72xf32, #tpu.memory_space<smem>>
    %107 = vector.broadcast %106 : f32 to vector<2x16x16xf32>
    %108 = arith.mulf %107, %35 : vector<2x16x16xf32>
    %109 = arith.addf %105, %108 : vector<2x16x16xf32>
    %c0_73 = arith.constant 0 : index
    %110 = memref.load %arg1[%c0_73] : memref<4xf32, #tpu.memory_space<smem>>
    %111 = vector.broadcast %110 : f32 to vector<2x16x16xf32>
    %112 = arith.addf %109, %111 : vector<2x16x16xf32>
    %c0_74 = arith.constant 0 : index
    %113 = memref.load %arg2[%c0_74] : memref<4xf32, #tpu.memory_space<smem>>
    %114 = vector.broadcast %113 : f32 to vector<2x16x16xf32>
    %115 = arith.mulf %112, %114 : vector<2x16x16xf32>
    %cst_75 = arith.constant 0.000000e+00 : f32
    %116 = vector.broadcast %cst_75 : f32 to vector<2x16x16xf32>
    %c18 = arith.constant 18 : index
    %117 = memref.load %arg0[%c18] : memref<72xf32, #tpu.memory_space<smem>>
    %118 = vector.broadcast %117 : f32 to vector<2x16x16xf32>
    %119 = arith.mulf %118, %1 : vector<2x16x16xf32>
    %120 = arith.addf %116, %119 : vector<2x16x16xf32>
    %c19 = arith.constant 19 : index
    %121 = memref.load %arg0[%c19] : memref<72xf32, #tpu.memory_space<smem>>
    %122 = vector.broadcast %121 : f32 to vector<2x16x16xf32>
    %123 = arith.mulf %122, %3 : vector<2x16x16xf32>
    %124 = arith.addf %120, %123 : vector<2x16x16xf32>
    %c20 = arith.constant 20 : index
    %125 = memref.load %arg0[%c20] : memref<72xf32, #tpu.memory_space<smem>>
    %126 = vector.broadcast %125 : f32 to vector<2x16x16xf32>
    %127 = arith.mulf %126, %5 : vector<2x16x16xf32>
    %128 = arith.addf %124, %127 : vector<2x16x16xf32>
    %c21 = arith.constant 21 : index
    %129 = memref.load %arg0[%c21] : memref<72xf32, #tpu.memory_space<smem>>
    %130 = vector.broadcast %129 : f32 to vector<2x16x16xf32>
    %131 = arith.mulf %130, %7 : vector<2x16x16xf32>
    %132 = arith.addf %128, %131 : vector<2x16x16xf32>
    %c22 = arith.constant 22 : index
    %133 = memref.load %arg0[%c22] : memref<72xf32, #tpu.memory_space<smem>>
    %134 = vector.broadcast %133 : f32 to vector<2x16x16xf32>
    %135 = arith.mulf %134, %9 : vector<2x16x16xf32>
    %136 = arith.addf %132, %135 : vector<2x16x16xf32>
    %c23 = arith.constant 23 : index
    %137 = memref.load %arg0[%c23] : memref<72xf32, #tpu.memory_space<smem>>
    %138 = vector.broadcast %137 : f32 to vector<2x16x16xf32>
    %139 = arith.mulf %138, %11 : vector<2x16x16xf32>
    %140 = arith.addf %136, %139 : vector<2x16x16xf32>
    %c24 = arith.constant 24 : index
    %141 = memref.load %arg0[%c24] : memref<72xf32, #tpu.memory_space<smem>>
    %142 = vector.broadcast %141 : f32 to vector<2x16x16xf32>
    %143 = arith.mulf %142, %13 : vector<2x16x16xf32>
    %144 = arith.addf %140, %143 : vector<2x16x16xf32>
    %c25 = arith.constant 25 : index
    %145 = memref.load %arg0[%c25] : memref<72xf32, #tpu.memory_space<smem>>
    %146 = vector.broadcast %145 : f32 to vector<2x16x16xf32>
    %147 = arith.mulf %146, %15 : vector<2x16x16xf32>
    %148 = arith.addf %144, %147 : vector<2x16x16xf32>
    %c26 = arith.constant 26 : index
    %149 = memref.load %arg0[%c26] : memref<72xf32, #tpu.memory_space<smem>>
    %150 = vector.broadcast %149 : f32 to vector<2x16x16xf32>
    %151 = arith.mulf %150, %17 : vector<2x16x16xf32>
    %152 = arith.addf %148, %151 : vector<2x16x16xf32>
    %c27 = arith.constant 27 : index
    %153 = memref.load %arg0[%c27] : memref<72xf32, #tpu.memory_space<smem>>
    %154 = vector.broadcast %153 : f32 to vector<2x16x16xf32>
    %155 = arith.mulf %154, %19 : vector<2x16x16xf32>
    %156 = arith.addf %152, %155 : vector<2x16x16xf32>
    %c28 = arith.constant 28 : index
    %157 = memref.load %arg0[%c28] : memref<72xf32, #tpu.memory_space<smem>>
    %158 = vector.broadcast %157 : f32 to vector<2x16x16xf32>
    %159 = arith.mulf %158, %21 : vector<2x16x16xf32>
    %160 = arith.addf %156, %159 : vector<2x16x16xf32>
    %c29 = arith.constant 29 : index
    %161 = memref.load %arg0[%c29] : memref<72xf32, #tpu.memory_space<smem>>
    %162 = vector.broadcast %161 : f32 to vector<2x16x16xf32>
    %163 = arith.mulf %162, %23 : vector<2x16x16xf32>
    %164 = arith.addf %160, %163 : vector<2x16x16xf32>
    %c30 = arith.constant 30 : index
    %165 = memref.load %arg0[%c30] : memref<72xf32, #tpu.memory_space<smem>>
    %166 = vector.broadcast %165 : f32 to vector<2x16x16xf32>
    %167 = arith.mulf %166, %25 : vector<2x16x16xf32>
    %168 = arith.addf %164, %167 : vector<2x16x16xf32>
    %c31 = arith.constant 31 : index
    %169 = memref.load %arg0[%c31] : memref<72xf32, #tpu.memory_space<smem>>
    %170 = vector.broadcast %169 : f32 to vector<2x16x16xf32>
    %171 = arith.mulf %170, %27 : vector<2x16x16xf32>
    %172 = arith.addf %168, %171 : vector<2x16x16xf32>
    %c32 = arith.constant 32 : index
    %173 = memref.load %arg0[%c32] : memref<72xf32, #tpu.memory_space<smem>>
    %174 = vector.broadcast %173 : f32 to vector<2x16x16xf32>
    %175 = arith.mulf %174, %29 : vector<2x16x16xf32>
    %176 = arith.addf %172, %175 : vector<2x16x16xf32>
    %c33 = arith.constant 33 : index
    %177 = memref.load %arg0[%c33] : memref<72xf32, #tpu.memory_space<smem>>
    %178 = vector.broadcast %177 : f32 to vector<2x16x16xf32>
    %179 = arith.mulf %178, %31 : vector<2x16x16xf32>
    %180 = arith.addf %176, %179 : vector<2x16x16xf32>
    %c34 = arith.constant 34 : index
    %181 = memref.load %arg0[%c34] : memref<72xf32, #tpu.memory_space<smem>>
    %182 = vector.broadcast %181 : f32 to vector<2x16x16xf32>
    %183 = arith.mulf %182, %33 : vector<2x16x16xf32>
    %184 = arith.addf %180, %183 : vector<2x16x16xf32>
    %c35 = arith.constant 35 : index
    %185 = memref.load %arg0[%c35] : memref<72xf32, #tpu.memory_space<smem>>
    %186 = vector.broadcast %185 : f32 to vector<2x16x16xf32>
    %187 = arith.mulf %186, %35 : vector<2x16x16xf32>
    %188 = arith.addf %184, %187 : vector<2x16x16xf32>
    %c1_76 = arith.constant 1 : index
    %189 = memref.load %arg1[%c1_76] : memref<4xf32, #tpu.memory_space<smem>>
    %190 = vector.broadcast %189 : f32 to vector<2x16x16xf32>
    %191 = arith.addf %188, %190 : vector<2x16x16xf32>
    %c1_77 = arith.constant 1 : index
    %192 = memref.load %arg2[%c1_77] : memref<4xf32, #tpu.memory_space<smem>>
    %193 = vector.broadcast %192 : f32 to vector<2x16x16xf32>
    %194 = arith.mulf %191, %193 : vector<2x16x16xf32>
    %c0_78 = arith.constant 0 : index
    %c0_79 = arith.constant 0 : index
    %c0_80 = arith.constant 0 : index
    %c0_81 = arith.constant 0 : index
    %195 = vector.load %arg4[%c0_78, %c0_79, %c0_80, %c0_81] : memref<2x2x16x16xf32, #tpu.memory_space<vmem>>, vector<2x1x16x16xf32>
    %196 = vector.shape_cast %195 : vector<2x1x16x16xf32> to vector<2x16x16xf32>
    %cst_82 = arith.constant 2.000000e+00 : f32
    %197 = vector.broadcast %cst_82 : f32 to vector<2x16x16xf32>
    %198 = arith.mulf %197, %194 : vector<2x16x16xf32>
    %199 = arith.subf %196, %115 : vector<2x16x16xf32>
    %200 = arith.mulf %199, %199 : vector<2x16x16xf32>
    %cst_83 = arith.constant 2.000000e+00 : f32
    %201 = vector.broadcast %cst_83 : f32 to vector<2x16x16xf32>
    %202 = arith.mulf %201, %194 : vector<2x16x16xf32>
    %203 = math.exp %202 : vector<2x16x16xf32>
    %204 = arith.divf %200, %203 : vector<2x16x16xf32>
    %205 = arith.addf %198, %204 : vector<2x16x16xf32>
    %cst_84 = arith.constant 1.83787704 : f32
    %206 = vector.broadcast %cst_84 : f32 to vector<2x16x16xf32>
    %207 = arith.addf %205, %206 : vector<2x16x16xf32>
    %cst_85 = arith.constant -5.000000e-01 : f32
    %208 = vector.broadcast %cst_85 : f32 to vector<2x16x16xf32>
    %209 = arith.mulf %208, %207 : vector<2x16x16xf32>
    %cst_86 = arith.constant dense<0.000000e+00> : vector<2x16xf32>
    %210 = vector.multi_reduction <add>, %209, %cst_86 [2] : vector<2x16x16xf32> to vector<2x16xf32>
    %cst_87 = arith.constant dense<0.000000e+00> : vector<2xf32>
    %211 = vector.multi_reduction <add>, %210, %cst_87 [1] : vector<2x16xf32> to vector<2xf32>
    %212 = vector.shape_cast %211 : vector<2xf32> to vector<2x1xf32>
    %213 = arith.addf %36, %212 : vector<2x1xf32>
    %cst_88 = arith.constant 0.000000e+00 : f32
    %214 = vector.broadcast %cst_88 : f32 to vector<2x16x16xf32>
    %c36 = arith.constant 36 : index
    %215 = memref.load %arg0[%c36] : memref<72xf32, #tpu.memory_space<smem>>
    %216 = vector.broadcast %215 : f32 to vector<2x16x16xf32>
    %217 = arith.mulf %216, %1 : vector<2x16x16xf32>
    %218 = arith.addf %214, %217 : vector<2x16x16xf32>
    %c37 = arith.constant 37 : index
    %219 = memref.load %arg0[%c37] : memref<72xf32, #tpu.memory_space<smem>>
    %220 = vector.broadcast %219 : f32 to vector<2x16x16xf32>
    %221 = arith.mulf %220, %3 : vector<2x16x16xf32>
    %222 = arith.addf %218, %221 : vector<2x16x16xf32>
    %c38 = arith.constant 38 : index
    %223 = memref.load %arg0[%c38] : memref<72xf32, #tpu.memory_space<smem>>
    %224 = vector.broadcast %223 : f32 to vector<2x16x16xf32>
    %225 = arith.mulf %224, %5 : vector<2x16x16xf32>
    %226 = arith.addf %222, %225 : vector<2x16x16xf32>
    %c39 = arith.constant 39 : index
    %227 = memref.load %arg0[%c39] : memref<72xf32, #tpu.memory_space<smem>>
    %228 = vector.broadcast %227 : f32 to vector<2x16x16xf32>
    %229 = arith.mulf %228, %7 : vector<2x16x16xf32>
    %230 = arith.addf %226, %229 : vector<2x16x16xf32>
    %c40 = arith.constant 40 : index
    %231 = memref.load %arg0[%c40] : memref<72xf32, #tpu.memory_space<smem>>
    %232 = vector.broadcast %231 : f32 to vector<2x16x16xf32>
    %233 = arith.mulf %232, %9 : vector<2x16x16xf32>
    %234 = arith.addf %230, %233 : vector<2x16x16xf32>
    %c41 = arith.constant 41 : index
    %235 = memref.load %arg0[%c41] : memref<72xf32, #tpu.memory_space<smem>>
    %236 = vector.broadcast %235 : f32 to vector<2x16x16xf32>
    %237 = arith.mulf %236, %11 : vector<2x16x16xf32>
    %238 = arith.addf %234, %237 : vector<2x16x16xf32>
    %c42 = arith.constant 42 : index
    %239 = memref.load %arg0[%c42] : memref<72xf32, #tpu.memory_space<smem>>
    %240 = vector.broadcast %239 : f32 to vector<2x16x16xf32>
    %241 = arith.mulf %240, %13 : vector<2x16x16xf32>
    %242 = arith.addf %238, %241 : vector<2x16x16xf32>
    %c43 = arith.constant 43 : index
    %243 = memref.load %arg0[%c43] : memref<72xf32, #tpu.memory_space<smem>>
    %244 = vector.broadcast %243 : f32 to vector<2x16x16xf32>
    %245 = arith.mulf %244, %15 : vector<2x16x16xf32>
    %246 = arith.addf %242, %245 : vector<2x16x16xf32>
    %c44 = arith.constant 44 : index
    %247 = memref.load %arg0[%c44] : memref<72xf32, #tpu.memory_space<smem>>
    %248 = vector.broadcast %247 : f32 to vector<2x16x16xf32>
    %249 = arith.mulf %248, %17 : vector<2x16x16xf32>
    %250 = arith.addf %246, %249 : vector<2x16x16xf32>
    %c45 = arith.constant 45 : index
    %251 = memref.load %arg0[%c45] : memref<72xf32, #tpu.memory_space<smem>>
    %252 = vector.broadcast %251 : f32 to vector<2x16x16xf32>
    %253 = arith.mulf %252, %19 : vector<2x16x16xf32>
    %254 = arith.addf %250, %253 : vector<2x16x16xf32>
    %c46 = arith.constant 46 : index
    %255 = memref.load %arg0[%c46] : memref<72xf32, #tpu.memory_space<smem>>
    %256 = vector.broadcast %255 : f32 to vector<2x16x16xf32>
    %257 = arith.mulf %256, %21 : vector<2x16x16xf32>
    %258 = arith.addf %254, %257 : vector<2x16x16xf32>
    %c47 = arith.constant 47 : index
    %259 = memref.load %arg0[%c47] : memref<72xf32, #tpu.memory_space<smem>>
    %260 = vector.broadcast %259 : f32 to vector<2x16x16xf32>
    %261 = arith.mulf %260, %23 : vector<2x16x16xf32>
    %262 = arith.addf %258, %261 : vector<2x16x16xf32>
    %c48 = arith.constant 48 : index
    %263 = memref.load %arg0[%c48] : memref<72xf32, #tpu.memory_space<smem>>
    %264 = vector.broadcast %263 : f32 to vector<2x16x16xf32>
    %265 = arith.mulf %264, %25 : vector<2x16x16xf32>
    %266 = arith.addf %262, %265 : vector<2x16x16xf32>
    %c49 = arith.constant 49 : index
    %267 = memref.load %arg0[%c49] : memref<72xf32, #tpu.memory_space<smem>>
    %268 = vector.broadcast %267 : f32 to vector<2x16x16xf32>
    %269 = arith.mulf %268, %27 : vector<2x16x16xf32>
    %270 = arith.addf %266, %269 : vector<2x16x16xf32>
    %c50 = arith.constant 50 : index
    %271 = memref.load %arg0[%c50] : memref<72xf32, #tpu.memory_space<smem>>
    %272 = vector.broadcast %271 : f32 to vector<2x16x16xf32>
    %273 = arith.mulf %272, %29 : vector<2x16x16xf32>
    %274 = arith.addf %270, %273 : vector<2x16x16xf32>
    %c51 = arith.constant 51 : index
    %275 = memref.load %arg0[%c51] : memref<72xf32, #tpu.memory_space<smem>>
    %276 = vector.broadcast %275 : f32 to vector<2x16x16xf32>
    %277 = arith.mulf %276, %31 : vector<2x16x16xf32>
    %278 = arith.addf %274, %277 : vector<2x16x16xf32>
    %c52 = arith.constant 52 : index
    %279 = memref.load %arg0[%c52] : memref<72xf32, #tpu.memory_space<smem>>
    %280 = vector.broadcast %279 : f32 to vector<2x16x16xf32>
    %281 = arith.mulf %280, %33 : vector<2x16x16xf32>
    %282 = arith.addf %278, %281 : vector<2x16x16xf32>
    %c53 = arith.constant 53 : index
    %283 = memref.load %arg0[%c53] : memref<72xf32, #tpu.memory_space<smem>>
    %284 = vector.broadcast %283 : f32 to vector<2x16x16xf32>
    %285 = arith.mulf %284, %35 : vector<2x16x16xf32>
    %286 = arith.addf %282, %285 : vector<2x16x16xf32>
    %c2_89 = arith.constant 2 : index
    %287 = memref.load %arg1[%c2_89] : memref<4xf32, #tpu.memory_space<smem>>
    %288 = vector.broadcast %287 : f32 to vector<2x16x16xf32>
    %289 = arith.addf %286, %288 : vector<2x16x16xf32>
    %c2_90 = arith.constant 2 : index
    %290 = memref.load %arg2[%c2_90] : memref<4xf32, #tpu.memory_space<smem>>
    %291 = vector.broadcast %290 : f32 to vector<2x16x16xf32>
    %292 = arith.mulf %289, %291 : vector<2x16x16xf32>
    %cst_91 = arith.constant 0.000000e+00 : f32
    %293 = vector.broadcast %cst_91 : f32 to vector<2x16x16xf32>
    %c54 = arith.constant 54 : index
    %294 = memref.load %arg0[%c54] : memref<72xf32, #tpu.memory_space<smem>>
    %295 = vector.broadcast %294 : f32 to vector<2x16x16xf32>
    %296 = arith.mulf %295, %1 : vector<2x16x16xf32>
    %297 = arith.addf %293, %296 : vector<2x16x16xf32>
    %c55 = arith.constant 55 : index
    %298 = memref.load %arg0[%c55] : memref<72xf32, #tpu.memory_space<smem>>
    %299 = vector.broadcast %298 : f32 to vector<2x16x16xf32>
    %300 = arith.mulf %299, %3 : vector<2x16x16xf32>
    %301 = arith.addf %297, %300 : vector<2x16x16xf32>
    %c56 = arith.constant 56 : index
    %302 = memref.load %arg0[%c56] : memref<72xf32, #tpu.memory_space<smem>>
    %303 = vector.broadcast %302 : f32 to vector<2x16x16xf32>
    %304 = arith.mulf %303, %5 : vector<2x16x16xf32>
    %305 = arith.addf %301, %304 : vector<2x16x16xf32>
    %c57 = arith.constant 57 : index
    %306 = memref.load %arg0[%c57] : memref<72xf32, #tpu.memory_space<smem>>
    %307 = vector.broadcast %306 : f32 to vector<2x16x16xf32>
    %308 = arith.mulf %307, %7 : vector<2x16x16xf32>
    %309 = arith.addf %305, %308 : vector<2x16x16xf32>
    %c58 = arith.constant 58 : index
    %310 = memref.load %arg0[%c58] : memref<72xf32, #tpu.memory_space<smem>>
    %311 = vector.broadcast %310 : f32 to vector<2x16x16xf32>
    %312 = arith.mulf %311, %9 : vector<2x16x16xf32>
    %313 = arith.addf %309, %312 : vector<2x16x16xf32>
    %c59 = arith.constant 59 : index
    %314 = memref.load %arg0[%c59] : memref<72xf32, #tpu.memory_space<smem>>
    %315 = vector.broadcast %314 : f32 to vector<2x16x16xf32>
    %316 = arith.mulf %315, %11 : vector<2x16x16xf32>
    %317 = arith.addf %313, %316 : vector<2x16x16xf32>
    %c60 = arith.constant 60 : index
    %318 = memref.load %arg0[%c60] : memref<72xf32, #tpu.memory_space<smem>>
    %319 = vector.broadcast %318 : f32 to vector<2x16x16xf32>
    %320 = arith.mulf %319, %13 : vector<2x16x16xf32>
    %321 = arith.addf %317, %320 : vector<2x16x16xf32>
    %c61 = arith.constant 61 : index
    %322 = memref.load %arg0[%c61] : memref<72xf32, #tpu.memory_space<smem>>
    %323 = vector.broadcast %322 : f32 to vector<2x16x16xf32>
    %324 = arith.mulf %323, %15 : vector<2x16x16xf32>
    %325 = arith.addf %321, %324 : vector<2x16x16xf32>
    %c62 = arith.constant 62 : index
    %326 = memref.load %arg0[%c62] : memref<72xf32, #tpu.memory_space<smem>>
    %327 = vector.broadcast %326 : f32 to vector<2x16x16xf32>
    %328 = arith.mulf %327, %17 : vector<2x16x16xf32>
    %329 = arith.addf %325, %328 : vector<2x16x16xf32>
    %c63 = arith.constant 63 : index
    %330 = memref.load %arg0[%c63] : memref<72xf32, #tpu.memory_space<smem>>
    %331 = vector.broadcast %330 : f32 to vector<2x16x16xf32>
    %332 = arith.mulf %331, %19 : vector<2x16x16xf32>
    %333 = arith.addf %329, %332 : vector<2x16x16xf32>
    %c64 = arith.constant 64 : index
    %334 = memref.load %arg0[%c64] : memref<72xf32, #tpu.memory_space<smem>>
    %335 = vector.broadcast %334 : f32 to vector<2x16x16xf32>
    %336 = arith.mulf %335, %21 : vector<2x16x16xf32>
    %337 = arith.addf %333, %336 : vector<2x16x16xf32>
    %c65 = arith.constant 65 : index
    %338 = memref.load %arg0[%c65] : memref<72xf32, #tpu.memory_space<smem>>
    %339 = vector.broadcast %338 : f32 to vector<2x16x16xf32>
    %340 = arith.mulf %339, %23 : vector<2x16x16xf32>
    %341 = arith.addf %337, %340 : vector<2x16x16xf32>
    %c66 = arith.constant 66 : index
    %342 = memref.load %arg0[%c66] : memref<72xf32, #tpu.memory_space<smem>>
    %343 = vector.broadcast %342 : f32 to vector<2x16x16xf32>
    %344 = arith.mulf %343, %25 : vector<2x16x16xf32>
    %345 = arith.addf %341, %344 : vector<2x16x16xf32>
    %c67 = arith.constant 67 : index
    %346 = memref.load %arg0[%c67] : memref<72xf32, #tpu.memory_space<smem>>
    %347 = vector.broadcast %346 : f32 to vector<2x16x16xf32>
    %348 = arith.mulf %347, %27 : vector<2x16x16xf32>
    %349 = arith.addf %345, %348 : vector<2x16x16xf32>
    %c68 = arith.constant 68 : index
    %350 = memref.load %arg0[%c68] : memref<72xf32, #tpu.memory_space<smem>>
    %351 = vector.broadcast %350 : f32 to vector<2x16x16xf32>
    %352 = arith.mulf %351, %29 : vector<2x16x16xf32>
    %353 = arith.addf %349, %352 : vector<2x16x16xf32>
    %c69 = arith.constant 69 : index
    %354 = memref.load %arg0[%c69] : memref<72xf32, #tpu.memory_space<smem>>
    %355 = vector.broadcast %354 : f32 to vector<2x16x16xf32>
    %356 = arith.mulf %355, %31 : vector<2x16x16xf32>
    %357 = arith.addf %353, %356 : vector<2x16x16xf32>
    %c70 = arith.constant 70 : index
    %358 = memref.load %arg0[%c70] : memref<72xf32, #tpu.memory_space<smem>>
    %359 = vector.broadcast %358 : f32 to vector<2x16x16xf32>
    %360 = arith.mulf %359, %33 : vector<2x16x16xf32>
    %361 = arith.addf %357, %360 : vector<2x16x16xf32>
    %c71 = arith.constant 71 : index
    %362 = memref.load %arg0[%c71] : memref<72xf32, #tpu.memory_space<smem>>
    %363 = vector.broadcast %362 : f32 to vector<2x16x16xf32>
    %364 = arith.mulf %363, %35 : vector<2x16x16xf32>
    %365 = arith.addf %361, %364 : vector<2x16x16xf32>
    %c3_92 = arith.constant 3 : index
    %366 = memref.load %arg1[%c3_92] : memref<4xf32, #tpu.memory_space<smem>>
    %367 = vector.broadcast %366 : f32 to vector<2x16x16xf32>
    %368 = arith.addf %365, %367 : vector<2x16x16xf32>
    %c3_93 = arith.constant 3 : index
    %369 = memref.load %arg2[%c3_93] : memref<4xf32, #tpu.memory_space<smem>>
    %370 = vector.broadcast %369 : f32 to vector<2x16x16xf32>
    %371 = arith.mulf %368, %370 : vector<2x16x16xf32>
    %c0_94 = arith.constant 0 : index
    %c1_95 = arith.constant 1 : index
    %c0_96 = arith.constant 0 : index
    %c0_97 = arith.constant 0 : index
    %372 = vector.load %arg4[%c0_94, %c1_95, %c0_96, %c0_97] : memref<2x2x16x16xf32, #tpu.memory_space<vmem>>, vector<2x1x16x16xf32>
    %373 = vector.shape_cast %372 : vector<2x1x16x16xf32> to vector<2x16x16xf32>
    %cst_98 = arith.constant 2.000000e+00 : f32
    %374 = vector.broadcast %cst_98 : f32 to vector<2x16x16xf32>
    %375 = arith.mulf %374, %371 : vector<2x16x16xf32>
    %376 = arith.subf %373, %292 : vector<2x16x16xf32>
    %377 = arith.mulf %376, %376 : vector<2x16x16xf32>
    %cst_99 = arith.constant 2.000000e+00 : f32
    %378 = vector.broadcast %cst_99 : f32 to vector<2x16x16xf32>
    %379 = arith.mulf %378, %371 : vector<2x16x16xf32>
    %380 = math.exp %379 : vector<2x16x16xf32>
    %381 = arith.divf %377, %380 : vector<2x16x16xf32>
    %382 = arith.addf %375, %381 : vector<2x16x16xf32>
    %cst_100 = arith.constant 1.83787704 : f32
    %383 = vector.broadcast %cst_100 : f32 to vector<2x16x16xf32>
    %384 = arith.addf %382, %383 : vector<2x16x16xf32>
    %cst_101 = arith.constant -5.000000e-01 : f32
    %385 = vector.broadcast %cst_101 : f32 to vector<2x16x16xf32>
    %386 = arith.mulf %385, %384 : vector<2x16x16xf32>
    %cst_102 = arith.constant dense<0.000000e+00> : vector<2x16xf32>
    %387 = vector.multi_reduction <add>, %386, %cst_102 [2] : vector<2x16x16xf32> to vector<2x16xf32>
    %cst_103 = arith.constant dense<0.000000e+00> : vector<2xf32>
    %388 = vector.multi_reduction <add>, %387, %cst_103 [1] : vector<2x16xf32> to vector<2xf32>
    %389 = vector.shape_cast %388 : vector<2xf32> to vector<2x1xf32>
    %390 = arith.addf %213, %389 : vector<2x1xf32>
    %c0_104 = arith.constant 0 : index
    %c0_105 = arith.constant 0 : index
    %391 = vector.load %arg5[%c0_104, %c0_105] : memref<2x1xf32, #tpu.memory_space<vmem>>, vector<2x1xf32>
    tpu.vector_store %arg5[%c0_104, %c0_105], %390 {strides = array<i32>} : memref<2x1xf32, #tpu.memory_space<vmem>>, vector<2x1xf32>,
    return
  }
}

</mosaic_0001>

<llo_original>
// kernel: tpu_custom_call.1
$region0: #{tpu_custom_call.1}
  #allocation0 [shape = 'u32[]', space=smem, size = 0x4, offset = 0x4, fixed_abs, tag = 'smem constant byte address 0x4 - core index']
  #allocation1 [shape = 'u32[72,128]{1,0:T(1,128)}', space=vmem, size = 0x9000, scoped, tag = 'internal scratch']
  %s0 = inlined_call_operand.vmem [shape: f32[72], index: 0, kind: input, shape index: {}]
  %s1 = inlined_call_operand.vmem [shape: f32[4], index: 1, kind: input, shape index: {}]
  %s2 = inlined_call_operand.vmem [shape: f32[4], index: 2, kind: input, shape index: {}]
  %s3 = inlined_call_operand.vmem [shape: f32[2,2,18,18], index: 3, kind: input, shape index: {}]
  %s4 = inlined_call_operand.vmem [shape: f32[2,2,16,16], index: 4, kind: input, shape index: {}]
  %s5 = inlined_call_operand.vmem [shape: f32[2,1], index: 5, kind: output, shape index: {}]
  %s6 = sld [smem:[#allocation0]]
  $region42: #{tpu_custom_call.1} parent=0
    _
  %s8 = ssub.s32 1, %s6
  %s9 = scalar_select 0, %s8, %s6
  $region1: #{tpu_custom_call.1} parent=0
    #allocation2 [shape = 'u8[512]{0}', space=smem, size = 0x200, scoped, tag = 'input window, operand 0, single buffered']
    #allocation3 [shape = 's32[1]{0}', space=sflag, size = 0x4, scoped, tag = 'scoped memory for tpu_custom_call.1']
    #allocation4 [shape = 'u8[512]{0}', space=smem, size = 0x200, scoped, tag = 'input window, operand 1, single buffered']
    #allocation5 [shape = 's32[1]{0}', space=sflag, size = 0x4, scoped, tag = 'scoped memory for tpu_custom_call.1']
    #allocation6 [shape = 'u8[512]{0}', space=smem, size = 0x200, scoped, tag = 'input window, operand 2, single buffered']
    %10 = vsyncpa [#allocation3], 0
    %11 = vsyncpa [#allocation5], 0
    // Predicated region
    $region2: #{tpu_custom_call.1} parent=1 // pred_check
      _
    $region3: #{tpu_custom_call.1} parent=1 // pred_check_branch
      %13 = sbr.rel (0) target = $region5
    $region4: #{tpu_custom_call.1} parent=1 // pred_region
      %15 = vsyncadd [#allocation3], 0
      %s17 = sshll.u32 %s0, 4
      %s18 = int_to_ptr.vmem [resolvable:$true] %s17
      %20 = dma.vmem_to_smem %s18, 16, [#allocation2], [#allocation3]
    $region5: #{tpu_custom_call.1} parent=1 // pred_fallthru
      _
    // Predicated region
    $region6: #{tpu_custom_call.1} parent=1 // pred_check
      _
    $region7: #{tpu_custom_call.1} parent=1 // pred_check_branch
      %22 = sbr.rel (0) target = $region9
    $region8: #{tpu_custom_call.1} parent=1 // pred_region
      %24 = vsyncadd [#allocation5], 0
      %s26 = sshll.u32 %s1, 4
      %s27 = int_to_ptr.vmem [resolvable:$true] %s26
      %29 = dma.vmem_to_smem %s27, 16, [#allocation4], [#allocation5]
    $region9: #{tpu_custom_call.1} parent=1 // pred_fallthru
      _
    // Predicated region
    $region10: #{tpu_custom_call.1} parent=1 // pred_check
      _
    $region11: #{tpu_custom_call.1} parent=1 // pred_check_branch
      %31 = sbr.rel (0) target = $region13
    $region12: #{tpu_custom_call.1} parent=1 // pred_region
      %33 = vsyncadd [#allocation5], 0
      %s35 = sshll.u32 %s2, 4
      %s36 = int_to_ptr.vmem [resolvable:$true] %s35
      %38 = dma.vmem_to_smem %s36, 16, [#allocation6], [#allocation5]
    $region13: #{tpu_custom_call.1} parent=1 // pred_fallthru
      _
    // Predicated region
    $region14: #{tpu_custom_call.1} parent=1 // pred_check
      _
    $region15: #{tpu_custom_call.1} parent=1 // pred_check_branch
      %40 = sbr.rel (0) target = $region17
    $region16: #{tpu_custom_call.1} parent=1 // pred_region
      _
    $region17: #{tpu_custom_call.1} parent=1 // pred_fallthru
      _
    // Predicated region
    $region18: #{tpu_custom_call.1} parent=1 // pred_check
      _
    $region19: #{tpu_custom_call.1} parent=1 // pred_check_branch
      %42 = sbr.rel (0) target = $region21
    $region20: #{tpu_custom_call.1} parent=1 // pred_region
      _
    $region21: #{tpu_custom_call.1} parent=1 // pred_fallthru
      _
    // Predicated region
    $region22: #{tpu_custom_call.1} parent=1 // pred_check
      _
    $region23: #{tpu_custom_call.1} parent=1 // pred_check_branch
      %44 = sbr.rel (0) target = $region25
    $region24: #{tpu_custom_call.1} parent=1 // pred_region
      %46 = dma.done [#allocation3], 16
    $region25: #{tpu_custom_call.1} parent=1 // pred_fallthru
      _
    // Predicated region
    $region26: #{tpu_custom_call.1} parent=1 // pred_check
      _
    $region27: #{tpu_custom_call.1} parent=1 // pred_check_branch
      %48 = sbr.rel (0) target = $region29
    $region28: #{tpu_custom_call.1} parent=1 // pred_region
      %50 = dma.done [#allocation5], 16
    $region29: #{tpu_custom_call.1} parent=1 // pred_fallthru
      _
    // Predicated region
    $region30: #{tpu_custom_call.1} parent=1 // pred_check
      _
    $region31: #{tpu_custom_call.1} parent=1 // pred_check_branch
      %52 = sbr.rel (0) target = $region33
    $region32: #{tpu_custom_call.1} parent=1 // pred_region
      %54 = dma.done [#allocation5], 16
    $region33: #{tpu_custom_call.1} parent=1 // pred_fallthru
      _
    %55 = sfence
    %v56 = vld [vmem:[%s3] sm:$0xff]
    %v57 = vld [vmem:[%s3 + $0x8] sm:$0xff]
    %v58 = vld [vmem:[%s3 + $0x30] sm:$0xff]
    %v59 = vld [vmem:[%s3 + $0x38] sm:$0xff]
    %v60 = vld [vmem:[%s3 + $0x1] sm:$0xff]
    %v61 = vld [vmem:[%s3 + $0x9] sm:$0xff]
    %v62 = vld [vmem:[%s3 + $0x31] sm:$0xff]
    %v63 = vld [vmem:[%s3 + $0x39] sm:$0xff]
    %v64 = vld [vmem:[%s3 + $0x2] sm:$0xff]
    %v65 = vld [vmem:[%s3 + $0xa] sm:$0xff]
    %v66 = vld [vmem:[%s3 + $0x32] sm:$0xff]
    %v67 = vld [vmem:[%s3 + $0x3a] sm:$0xff]
    %s68 = scalar_lea.vmem %s3, 24
    %v69 = vld [vmem:[%s68] sm:$0xff]
    %v70 = vld [vmem:[%s68 + $0x8] sm:$0xff]
    %v71 = vld [vmem:[%s68 + $0x30] sm:$0xff]
    %v72 = vld [vmem:[%s68 + $0x38] sm:$0xff]
    %v73 = vld [vmem:[%s68 + $0x1] sm:$0xff]
    %v74 = vld [vmem:[%s68 + $0x9] sm:$0xff]
    %v75 = vld [vmem:[%s68 + $0x31] sm:$0xff]
    %v76 = vld [vmem:[%s68 + $0x39] sm:$0xff]
    %v77 = vld [vmem:[%s68 + $0x2] sm:$0xff]
    %v78 = vld [vmem:[%s68 + $0xa] sm:$0xff]
    %v79 = vld [vmem:[%s68 + $0x32] sm:$0xff]
    %v80 = vld [vmem:[%s68 + $0x3a] sm:$0xff]
    %s81 = sld [smem:[#allocation2]]
    %v82 = vstv %s81
    %v83 = vmul.f32 %v82, %v56
    %v84 = vmul.f32 %v82, %v57
    %v85 = vmul.f32 %v82, %v58
    %v86 = vmul.f32 %v82, %v59
    %v87 = vadd.f32 %v83, 0.0
    %v88 = vadd.f32 %v84, 0.0
    %v89 = vadd.f32 %v85, 0.0
    %v90 = vadd.f32 %v86, 0.0
    %s91 = sld [smem:[#allocation2 + $0x1]]
    %v92 = vstv %s91
    %v93 = vmul.f32 %v92, %v56
    %v94 = vmul.f32 %v92, %v57
    %v95 = vmul.f32 %v92, %v58
    %v96 = vmul.f32 %v92, %v59
    %101 = vrot.lane.b32.xlu0 %v93, 127
    %v102 = vpop.permute.xlu0 %101
    %103 = vrot.lane.b32.xlu0 %v94, 127
    %v104 = vpop.permute.xlu0 %103
    %105 = vrot.lane.b32.xlu0 %v95, 127
    %v106 = vpop.permute.xlu0 %105
    %107 = vrot.lane.b32.xlu0 %v96, 127
    %v108 = vpop.permute.xlu0 %107
    %v113 = vadd.f32 %v87, %v102
    %v114 = vadd.f32 %v88, %v104
    %v115 = vadd.f32 %v89, %v106
    %v116 = vadd.f32 %v90, %v108
    %s117 = sld [smem:[#allocation2 + $0x2]]
    %v118 = vstv %s117
    %v119 = vmul.f32 %v118, %v56
    %v120 = vmul.f32 %v118, %v57
    %v121 = vmul.f32 %v118, %v58
    %v122 = vmul.f32 %v118, %v59
    %127 = vrot.lane.b32.xlu0 %v119, 126
    %v128 = vpop.permute.xlu0 %127
    %129 = vrot.lane.b32.xlu0 %v120, 126
    %v130 = vpop.permute.xlu0 %129
    %131 = vrot.lane.b32.xlu0 %v121, 126
    %v132 = vpop.permute.xlu0 %131
    %133 = vrot.lane.b32.xlu0 %v122, 126
    %v134 = vpop.permute.xlu0 %133
    %v139 = vadd.f32 %v113, %v128
    %v140 = vadd.f32 %v114, %v130
    %v141 = vadd.f32 %v115, %v132
    %v142 = vadd.f32 %v116, %v134
    %s143 = sld [smem:[#allocation2 + $0x3]]
    %v144 = vstv %s143
    %v145 = vmul.f32 %v144, %v60
    %v146 = vmul.f32 %v144, %v61
    %v147 = vmul.f32 %v144, %v62
    %v148 = vmul.f32 %v144, %v63
    %v149 = vadd.f32 %v139, %v145
    %v150 = vadd.f32 %v140, %v146
    %v151 = vadd.f32 %v141, %v147
    %v152 = vadd.f32 %v142, %v148
    %s153 = sld [smem:[#allocation2 + $0x4]]
    %v154 = vstv %s153
    %v155 = vmul.f32 %v154, %v60
    %v156 = vmul.f32 %v154, %v61
    %v157 = vmul.f32 %v154, %v62
    %v158 = vmul.f32 %v154, %v63
    %163 = vrot.lane.b32.xlu0 %v155, 127
    %v164 = vpop.permute.xlu0 %163
    %165 = vrot.lane.b32.xlu0 %v156, 127
    %v166 = vpop.permute.xlu0 %165
    %167 = vrot.lane.b32.xlu0 %v157, 127
    %v168 = vpop.permute.xlu0 %167
    %169 = vrot.lane.b32.xlu0 %v158, 127
    %v170 = vpop.permute.xlu0 %169
    %v175 = vadd.f32 %v149, %v164
    %v176 = vadd.f32 %v150, %v166
    %v177 = vadd.f32 %v151, %v168
    %v178 = vadd.f32 %v152, %v170
    %s179 = sld [smem:[#allocation2 + $0x5]]
    %v180 = vstv %s179
    %v181 = vmul.f32 %v180, %v60
    %v182 = vmul.f32 %v180, %v61
    %v183 = vmul.f32 %v180, %v62
    %v184 = vmul.f32 %v180, %v63
    %189 = vrot.lane.b32.xlu0 %v181, 126
    %v190 = vpop.permute.xlu0 %189
    %191 = vrot.lane.b32.xlu0 %v182, 126
    %v192 = vpop.permute.xlu0 %191
    %193 = vrot.lane.b32.xlu0 %v183, 126
    %v194 = vpop.permute.xlu0 %193
    %195 = vrot.lane.b32.xlu0 %v184, 126
    %v196 = vpop.permute.xlu0 %195
    %v201 = vadd.f32 %v175, %v190
    %v202 = vadd.f32 %v176, %v192
    %v203 = vadd.f32 %v177, %v194
    %v204 = vadd.f32 %v178, %v196
    %s205 = sld [smem:[#allocation2 + $0x6]]
    %v206 = vstv %s205
    %v207 = vmul.f32 %v206, %v64
    %v208 = vmul.f32 %v206, %v65
    %v209 = vmul.f32 %v206, %v66
    %v210 = vmul.f32 %v206, %v67
    %v211 = vadd.f32 %v201, %v207
    %v212 = vadd.f32 %v202, %v208
    %v213 = vadd.f32 %v203, %v209
    %v214 = vadd.f32 %v204, %v210
    %s215 = sld [smem:[#allocation2 + $0x7]]
    %v216 = vstv %s215
    %v217 = vmul.f32 %v216, %v64
    %v218 = vmul.f32 %v216, %v65
    %v219 = vmul.f32 %v216, %v66
    %v220 = vmul.f32 %v216, %v67
    %225 = vrot.lane.b32.xlu0 %v217, 127
    %v226 = vpop.permute.xlu0 %225
    %227 = vrot.lane.b32.xlu0 %v218, 127
    %v228 = vpop.permute.xlu0 %227
    %229 = vrot.lane.b32.xlu0 %v219, 127
    %v230 = vpop.permute.xlu0 %229
    %231 = vrot.lane.b32.xlu0 %v220, 127
    %v232 = vpop.permute.xlu0 %231
    %v237 = vadd.f32 %v211, %v226
    %v238 = vadd.f32 %v212, %v228
    %v239 = vadd.f32 %v213, %v230
    %v240 = vadd.f32 %v214, %v232
    %s241 = sld [smem:[#allocation2 + $0x8]]
    %v242 = vstv %s241
    %v243 = vmul.f32 %v242, %v64
    %v244 = vmul.f32 %v242, %v65
    %v245 = vmul.f32 %v242, %v66
    %v246 = vmul.f32 %v242, %v67
    %251 = vrot.lane.b32.xlu0 %v243, 126
    %v252 = vpop.permute.xlu0 %251
    %253 = vrot.lane.b32.xlu0 %v244, 126
    %v254 = vpop.permute.xlu0 %253
    %255 = vrot.lane.b32.xlu0 %v245, 126
    %v256 = vpop.permute.xlu0 %255
    %257 = vrot.lane.b32.xlu0 %v246, 126
    %v258 = vpop.permute.xlu0 %257
    %v263 = vadd.f32 %v237, %v252
    %v264 = vadd.f32 %v238, %v254
    %v265 = vadd.f32 %v239, %v256
    %v266 = vadd.f32 %v240, %v258
    %s267 = sld [smem:[#allocation2 + $0x9]]
    %v268 = vstv %s267
    %v269 = vmul.f32 %v268, %v69
    %v270 = vmul.f32 %v268, %v70
    %v271 = vmul.f32 %v268, %v71
    %v272 = vmul.f32 %v268, %v72
    %v273 = vadd.f32 %v263, %v269
    %v274 = vadd.f32 %v264, %v270
    %v275 = vadd.f32 %v265, %v271
    %v276 = vadd.f32 %v266, %v272
    %s277 = sld [smem:[#allocation2 + $0xa]]
    %v278 = vstv %s277
    %v279 = vmul.f32 %v278, %v69
    %v280 = vmul.f32 %v278, %v70
    %v281 = vmul.f32 %v278, %v71
    %v282 = vmul.f32 %v278, %v72
    %287 = vrot.lane.b32.xlu0 %v279, 127
    %v288 = vpop.permute.xlu0 %287
    %289 = vrot.lane.b32.xlu0 %v280, 127
    %v290 = vpop.permute.xlu0 %289
    %291 = vrot.lane.b32.xlu0 %v281, 127
    %v292 = vpop.permute.xlu0 %291
    %293 = vrot.lane.b32.xlu0 %v282, 127
    %v294 = vpop.permute.xlu0 %293
    %v299 = vadd.f32 %v273, %v288
    %v300 = vadd.f32 %v274, %v290
    %v301 = vadd.f32 %v275, %v292
    %v302 = vadd.f32 %v276, %v294
    %s303 = sld [smem:[#allocation2 + $0xb]]
    %v304 = vstv %s303
    %v305 = vmul.f32 %v304, %v69
    %v306 = vmul.f32 %v304, %v70
    %v307 = vmul.f32 %v304, %v71
    %v308 = vmul.f32 %v304, %v72
    %313 = vrot.lane.b32.xlu0 %v305, 126
    %v314 = vpop.permute.xlu0 %313
    %315 = vrot.lane.b32.xlu0 %v306, 126
    %v316 = vpop.permute.xlu0 %315
    %317 = vrot.lane.b32.xlu0 %v307, 126
    %v318 = vpop.permute.xlu0 %317
    %319 = vrot.lane.b32.xlu0 %v308, 126
    %v320 = vpop.permute.xlu0 %319
    %v325 = vadd.f32 %v299, %v314
    %v326 = vadd.f32 %v300, %v316
    %v327 = vadd.f32 %v301, %v318
    %v328 = vadd.f32 %v302, %v320
    %s329 = sld [smem:[#allocation2 + $0xc]]
    %v330 = vstv %s329
    %v331 = vmul.f32 %v330, %v73
    %v332 = vmul.f32 %v330, %v74
    %v333 = vmul.f32 %v330, %v75
    %v334 = vmul.f32 %v330, %v76
    %v335 = vadd.f32 %v325, %v331
    %v336 = vadd.f32 %v326, %v332
    %v337 = vadd.f32 %v327, %v333
    %v338 = vadd.f32 %v328, %v334
    %s339 = sld [smem:[#allocation2 + $0xd]]
    %v340 = vstv %s339
    %v341 = vmul.f32 %v340, %v73
    %v342 = vmul.f32 %v340, %v74
    %v343 = vmul.f32 %v340, %v75
    %v344 = vmul.f32 %v340, %v76
    %349 = vrot.lane.b32.xlu0 %v341, 127
    %v350 = vpop.permute.xlu0 %349
    %351 = vrot.lane.b32.xlu0 %v342, 127
    %v352 = vpop.permute.xlu0 %351
    %353 = vrot.lane.b32.xlu0 %v343, 127
    %v354 = vpop.permute.xlu0 %353
    %355 = vrot.lane.b32.xlu0 %v344, 127
    %v356 = vpop.permute.xlu0 %355
    %v361 = vadd.f32 %v335, %v350
    %v362 = vadd.f32 %v336, %v352
    %v363 = vadd.f32 %v337, %v354
    %v364 = vadd.f32 %v338, %v356
    %s365 = sld [smem:[#allocation2 + $0xe]]
    %v366 = vstv %s365
    %v367 = vmul.f32 %v366, %v73
    %v368 = vmul.f32 %v366, %v74
    %v369 = vmul.f32 %v366, %v75
    %v370 = vmul.f32 %v366, %v76
    %375 = vrot.lane.b32.xlu0 %v367, 126
    %v376 = vpop.permute.xlu0 %375
    %377 = vrot.lane.b32.xlu0 %v368, 126
    %v378 = vpop.permute.xlu0 %377
    %379 = vrot.lane.b32.xlu0 %v369, 126
    %v380 = vpop.permute.xlu0 %379
    %381 = vrot.lane.b32.xlu0 %v370, 126
    %v382 = vpop.permute.xlu0 %381
    %v387 = vadd.f32 %v361, %v376
    %v388 = vadd.f32 %v362, %v378
    %v389 = vadd.f32 %v363, %v380
    %v390 = vadd.f32 %v364, %v382
    %s391 = sld [smem:[#allocation2 + $0xf]]
    %v392 = vstv %s391
    %v393 = vmul.f32 %v392, %v77
    %v394 = vmul.f32 %v392, %v78
    %v395 = vmul.f32 %v392, %v79
    %v396 = vmul.f32 %v392, %v80
    %v397 = vadd.f32 %v387, %v393
    %v398 = vadd.f32 %v388, %v394
    %v399 = vadd.f32 %v389, %v395
    %v400 = vadd.f32 %v390, %v396
    %s401 = sld [smem:[#allocation2 + $0x10]]
    %v402 = vstv %s401
    %v403 = vmul.f32 %v402, %v77
    %v404 = vmul.f32 %v402, %v78
    %v405 = vmul.f32 %v402, %v79
    %v406 = vmul.f32 %v402, %v80
    %411 = vrot.lane.b32.xlu0 %v403, 127
    %v412 = vpop.permute.xlu0 %411
    %413 = vrot.lane.b32.xlu0 %v404, 127
    %v414 = vpop.permute.xlu0 %413
    %415 = vrot.lane.b32.xlu0 %v405, 127
    %v416 = vpop.permute.xlu0 %415
    %417 = vrot.lane.b32.xlu0 %v406, 127
    %v418 = vpop.permute.xlu0 %417
    %v423 = vadd.f32 %v397, %v412
    %v424 = vadd.f32 %v398, %v414
    %v425 = vadd.f32 %v399, %v416
    %v426 = vadd.f32 %v400, %v418
    %s427 = sld [smem:[#allocation2 + $0x11]]
    %v428 = vstv %s427
    %v429 = vmul.f32 %v428, %v77
    %v430 = vmul.f32 %v428, %v78
    %v431 = vmul.f32 %v428, %v79
    %v432 = vmul.f32 %v428, %v80
    %437 = vrot.lane.b32.xlu0 %v429, 126
    %v438 = vpop.permute.xlu0 %437
    %439 = vrot.lane.b32.xlu0 %v430, 126
    %v440 = vpop.permute.xlu0 %439
    %441 = vrot.lane.b32.xlu0 %v431, 126
    %v442 = vpop.permute.xlu0 %441
    %443 = vrot.lane.b32.xlu0 %v432, 126
    %v444 = vpop.permute.xlu0 %443
    %v449 = vadd.f32 %v423, %v438
    %v450 = vadd.f32 %v424, %v440
    %v451 = vadd.f32 %v425, %v442
    %v452 = vadd.f32 %v426, %v444
    %s453 = sld [smem:[#allocation4]]
    %v454 = vstv %s453
    %v455 = vadd.f32 %v449, %v454
    %v456 = vadd.f32 %v450, %v454
    %v457 = vadd.f32 %v451, %v454
    %v458 = vadd.f32 %v452, %v454
    %s459 = sld [smem:[#allocation6]]
    %v460 = vstv %s459
    %v461 = vmul.f32 %v455, %v460
    %v462 = vmul.f32 %v456, %v460
    %v463 = vmul.f32 %v457, %v460
    %v464 = vmul.f32 %v458, %v460
    %s465 = sld [smem:[#allocation2 + $0x12]]
    %v466 = vstv %s465
    %v467 = vmul.f32 %v466, %v56
    %v468 = vmul.f32 %v466, %v57
    %v469 = vmul.f32 %v466, %v58
    %v470 = vmul.f32 %v466, %v59
    %v471 = vadd.f32 %v467, 0.0
    %v472 = vadd.f32 %v468, 0.0
    %v473 = vadd.f32 %v469, 0.0
    %v474 = vadd.f32 %v470, 0.0
    %s475 = sld [smem:[#allocation2 + $0x13]]
    %v476 = vstv %s475
    %v477 = vmul.f32 %v476, %v56
    %v478 = vmul.f32 %v476, %v57
    %v479 = vmul.f32 %v476, %v58
    %v480 = vmul.f32 %v476, %v59
    %485 = vrot.lane.b32.xlu0 %v477, 127
    %v486 = vpop.permute.xlu0 %485
    %487 = vrot.lane.b32.xlu0 %v478, 127
    %v488 = vpop.permute.xlu0 %487
    %489 = vrot.lane.b32.xlu0 %v479, 127
    %v490 = vpop.permute.xlu0 %489
    %491 = vrot.lane.b32.xlu0 %v480, 127
    %v492 = vpop.permute.xlu0 %491
    %v497 = vadd.f32 %v471, %v486
    %v498 = vadd.f32 %v472, %v488
    %v499 = vadd.f32 %v473, %v490
    %v500 = vadd.f32 %v474, %v492
    %s501 = sld [smem:[#allocation2 + $0x14]]
    %v502 = vstv %s501
    %v503 = vmul.f32 %v502, %v56
    %v504 = vmul.f32 %v502, %v57
    %v505 = vmul.f32 %v502, %v58
    %v506 = vmul.f32 %v502, %v59
    %511 = vrot.lane.b32.xlu0 %v503, 126
    %v512 = vpop.permute.xlu0 %511
    %513 = vrot.lane.b32.xlu0 %v504, 126
    %v514 = vpop.permute.xlu0 %513
    %515 = vrot.lane.b32.xlu0 %v505, 126
    %v516 = vpop.permute.xlu0 %515
    %517 = vrot.lane.b32.xlu0 %v506, 126
    %v518 = vpop.permute.xlu0 %517
    %v523 = vadd.f32 %v497, %v512
    %v524 = vadd.f32 %v498, %v514
    %v525 = vadd.f32 %v499, %v516
    %v526 = vadd.f32 %v500, %v518
    %s527 = sld [smem:[#allocation2 + $0x15]]
    %v528 = vstv %s527
    %v529 = vmul.f32 %v528, %v60
    %v530 = vmul.f32 %v528, %v61
    %v531 = vmul.f32 %v528, %v62
    %v532 = vmul.f32 %v528, %v63
    %v533 = vadd.f32 %v523, %v529
    %v534 = vadd.f32 %v524, %v530
    %v535 = vadd.f32 %v525, %v531
    %v536 = vadd.f32 %v526, %v532
    %s537 = sld [smem:[#allocation2 + $0x16]]
    %v538 = vstv %s537
    %v539 = vmul.f32 %v538, %v60
    %v540 = vmul.f32 %v538, %v61
    %v541 = vmul.f32 %v538, %v62
    %v542 = vmul.f32 %v538, %v63
    %547 = vrot.lane.b32.xlu0 %v539, 127
    %v548 = vpop.permute.xlu0 %547
    %549 = vrot.lane.b32.xlu0 %v540, 127
    %v550 = vpop.permute.xlu0 %549
    %551 = vrot.lane.b32.xlu0 %v541, 127
    %v552 = vpop.permute.xlu0 %551
    %553 = vrot.lane.b32.xlu0 %v542, 127
    %v554 = vpop.permute.xlu0 %553
    %v559 = vadd.f32 %v533, %v548
    %v560 = vadd.f32 %v534, %v550
    %v561 = vadd.f32 %v535, %v552
    %v562 = vadd.f32 %v536, %v554
    %s563 = sld [smem:[#allocation2 + $0x17]]
    %v564 = vstv %s563
    %v565 = vmul.f32 %v564, %v60
    %v566 = vmul.f32 %v564, %v61
    %v567 = vmul.f32 %v564, %v62
    %v568 = vmul.f32 %v564, %v63
    %573 = vrot.lane.b32.xlu0 %v565, 126
    %v574 = vpop.permute.xlu0 %573
    %575 = vrot.lane.b32.xlu0 %v566, 126
    %v576 = vpop.permute.xlu0 %575
    %577 = vrot.lane.b32.xlu0 %v567, 126
    %v578 = vpop.permute.xlu0 %577
    %579 = vrot.lane.b32.xlu0 %v568, 126
    %v580 = vpop.permute.xlu0 %579
    %v585 = vadd.f32 %v559, %v574
    %v586 = vadd.f32 %v560, %v576
    %v587 = vadd.f32 %v561, %v578
    %v588 = vadd.f32 %v562, %v580
    %s589 = sld [smem:[#allocation2 + $0x18]]
    %v590 = vstv %s589
    %v591 = vmul.f32 %v590, %v64
    %v592 = vmul.f32 %v590, %v65
    %v593 = vmul.f32 %v590, %v66
    %v594 = vmul.f32 %v590, %v67
    %v595 = vadd.f32 %v585, %v591
    %v596 = vadd.f32 %v586, %v592
    %v597 = vadd.f32 %v587, %v593
    %v598 = vadd.f32 %v588, %v594
    %s599 = sld [smem:[#allocation2 + $0x19]]
    %v600 = vstv %s599
    %v601 = vmul.f32 %v600, %v64
    %v602 = vmul.f32 %v600, %v65
    %v603 = vmul.f32 %v600, %v66
    %v604 = vmul.f32 %v600, %v67
    %609 = vrot.lane.b32.xlu0 %v601, 127
    %v610 = vpop.permute.xlu0 %609
    %611 = vrot.lane.b32.xlu0 %v602, 127
    %v612 = vpop.permute.xlu0 %611
    %613 = vrot.lane.b32.xlu0 %v603, 127
    %v614 = vpop.permute.xlu0 %613
    %615 = vrot.lane.b32.xlu0 %v604, 127
    %v616 = vpop.permute.xlu0 %615
    %v621 = vadd.f32 %v595, %v610
    %v622 = vadd.f32 %v596, %v612
    %v623 = vadd.f32 %v597, %v614
    %v624 = vadd.f32 %v598, %v616
    %s625 = sld [smem:[#allocation2 + $0x1a]]
    %v626 = vstv %s625
    %v627 = vmul.f32 %v626, %v64
    %v628 = vmul.f32 %v626, %v65
    %v629 = vmul.f32 %v626, %v66
    %v630 = vmul.f32 %v626, %v67
    %635 = vrot.lane.b32.xlu0 %v627, 126
    %v636 = vpop.permute.xlu0 %635
    %637 = vrot.lane.b32.xlu0 %v628, 126
    %v638 = vpop.permute.xlu0 %637
    %639 = vrot.lane.b32.xlu0 %v629, 126
    %v640 = vpop.permute.xlu0 %639
    %641 = vrot.lane.b32.xlu0 %v630, 126
    %v642 = vpop.permute.xlu0 %641
    %v647 = vadd.f32 %v621, %v636
    %v648 = vadd.f32 %v622, %v638
    %v649 = vadd.f32 %v623, %v640
    %v650 = vadd.f32 %v624, %v642
    %s651 = sld [smem:[#allocation2 + $0x1b]]
    %v652 = vstv %s651
    %v653 = vmul.f32 %v652, %v69
    %v654 = vmul.f32 %v652, %v70
    %v655 = vmul.f32 %v652, %v71
    %v656 = vmul.f32 %v652, %v72
    %v657 = vadd.f32 %v647, %v653
    %v658 = vadd.f32 %v648, %v654
    %v659 = vadd.f32 %v649, %v655
    %v660 = vadd.f32 %v650, %v656
    %s661 = sld [smem:[#allocation2 + $0x1c]]
    %v662 = vstv %s661
    %v663 = vmul.f32 %v662, %v69
    %v664 = vmul.f32 %v662, %v70
    %v665 = vmul.f32 %v662, %v71
    %v666 = vmul.f32 %v662, %v72
    %671 = vrot.lane.b32.xlu0 %v663, 127
    %v672 = vpop.permute.xlu0 %671
    %673 = vrot.lane.b32.xlu0 %v664, 127
    %v674 = vpop.permute.xlu0 %673
    %675 = vrot.lane.b32.xlu0 %v665, 127
    %v676 = vpop.permute.xlu0 %675
    %677 = vrot.lane.b32.xlu0 %v666, 127
    %v678 = vpop.permute.xlu0 %677
    %v683 = vadd.f32 %v657, %v672
    %v684 = vadd.f32 %v658, %v674
    %v685 = vadd.f32 %v659, %v676
    %v686 = vadd.f32 %v660, %v678
    %s687 = sld [smem:[#allocation2 + $0x1d]]
    %v688 = vstv %s687
    %v689 = vmul.f32 %v688, %v69
    %v690 = vmul.f32 %v688, %v70
    %v691 = vmul.f32 %v688, %v71
    %v692 = vmul.f32 %v688, %v72
    %697 = vrot.lane.b32.xlu0 %v689, 126
    %v698 = vpop.permute.xlu0 %697
    %699 = vrot.lane.b32.xlu0 %v690, 126
    %v700 = vpop.permute.xlu0 %699
    %701 = vrot.lane.b32.xlu0 %v691, 126
    %v702 = vpop.permute.xlu0 %701
    %703 = vrot.lane.b32.xlu0 %v692, 126
    %v704 = vpop.permute.xlu0 %703
    %v709 = vadd.f32 %v683, %v698
    %v710 = vadd.f32 %v684, %v700
    %v711 = vadd.f32 %v685, %v702
    %v712 = vadd.f32 %v686, %v704
    %s713 = sld [smem:[#allocation2 + $0x1e]]
    %v714 = vstv %s713
    %v715 = vmul.f32 %v714, %v73
    %v716 = vmul.f32 %v714, %v74
    %v717 = vmul.f32 %v714, %v75
    %v718 = vmul.f32 %v714, %v76
    %v719 = vadd.f32 %v709, %v715
    %v720 = vadd.f32 %v710, %v716
    %v721 = vadd.f32 %v711, %v717
    %v722 = vadd.f32 %v712, %v718
    %s723 = sld [smem:[#allocation2 + $0x1f]]
    %v724 = vstv %s723
    %v725 = vmul.f32 %v724, %v73
    %v726 = vmul.f32 %v724, %v74
    %v727 = vmul.f32 %v724, %v75
    %v728 = vmul.f32 %v724, %v76
    %733 = vrot.lane.b32.xlu0 %v725, 127
    %v734 = vpop.permute.xlu0 %733
    %735 = vrot.lane.b32.xlu0 %v726, 127
    %v736 = vpop.permute.xlu0 %735
    %737 = vrot.lane.b32.xlu0 %v727, 127
    %v738 = vpop.permute.xlu0 %737
    %739 = vrot.lane.b32.xlu0 %v728, 127
    %v740 = vpop.permute.xlu0 %739
    %v745 = vadd.f32 %v719, %v734
    %v746 = vadd.f32 %v720, %v736
    %v747 = vadd.f32 %v721, %v738
    %v748 = vadd.f32 %v722, %v740
    %s749 = sld [smem:[#allocation2 + $0x20]]
    %v750 = vstv %s749
    %v751 = vmul.f32 %v750, %v73
    %v752 = vmul.f32 %v750, %v74
    %v753 = vmul.f32 %v750, %v75
    %v754 = vmul.f32 %v750, %v76
    %759 = vrot.lane.b32.xlu0 %v751, 126
    %v760 = vpop.permute.xlu0 %759
    %761 = vrot.lane.b32.xlu0 %v752, 126
    %v762 = vpop.permute.xlu0 %761
    %763 = vrot.lane.b32.xlu0 %v753, 126
    %v764 = vpop.permute.xlu0 %763
    %765 = vrot.lane.b32.xlu0 %v754, 126
    %v766 = vpop.permute.xlu0 %765
    %v771 = vadd.f32 %v745, %v760
    %v772 = vadd.f32 %v746, %v762
    %v773 = vadd.f32 %v747, %v764
    %v774 = vadd.f32 %v748, %v766
    %s775 = sld [smem:[#allocation2 + $0x21]]
    %v776 = vstv %s775
    %v777 = vmul.f32 %v776, %v77
    %v778 = vmul.f32 %v776, %v78
    %v779 = vmul.f32 %v776, %v79
    %v780 = vmul.f32 %v776, %v80
    %v781 = vadd.f32 %v771, %v777
    %v782 = vadd.f32 %v772, %v778
    %v783 = vadd.f32 %v773, %v779
    %v784 = vadd.f32 %v774, %v780
    %s785 = sld [smem:[#allocation2 + $0x22]]
    %v786 = vstv %s785
    %v787 = vmul.f32 %v786, %v77
    %v788 = vmul.f32 %v786, %v78
    %v789 = vmul.f32 %v786, %v79
    %v790 = vmul.f32 %v786, %v80
    %795 = vrot.lane.b32.xlu0 %v787, 127
    %v796 = vpop.permute.xlu0 %795
    %797 = vrot.lane.b32.xlu0 %v788, 127
    %v798 = vpop.permute.xlu0 %797
    %799 = vrot.lane.b32.xlu0 %v789, 127
    %v800 = vpop.permute.xlu0 %799
    %801 = vrot.lane.b32.xlu0 %v790, 127
    %v802 = vpop.permute.xlu0 %801
    %v807 = vadd.f32 %v781, %v796
    %v808 = vadd.f32 %v782, %v798
    %v809 = vadd.f32 %v783, %v800
    %v810 = vadd.f32 %v784, %v802
    %s811 = sld [smem:[#allocation2 + $0x23]]
    %v812 = vstv %s811
    %v813 = vmul.f32 %v812, %v77
    %v814 = vmul.f32 %v812, %v78
    %v815 = vmul.f32 %v812, %v79
    %v816 = vmul.f32 %v812, %v80
    %821 = vrot.lane.b32.xlu0 %v813, 126
    %v822 = vpop.permute.xlu0 %821
    %823 = vrot.lane.b32.xlu0 %v814, 126
    %v824 = vpop.permute.xlu0 %823
    %825 = vrot.lane.b32.xlu0 %v815, 126
    %v826 = vpop.permute.xlu0 %825
    %827 = vrot.lane.b32.xlu0 %v816, 126
    %v828 = vpop.permute.xlu0 %827
    %v833 = vadd.f32 %v807, %v822
    %v834 = vadd.f32 %v808, %v824
    %v835 = vadd.f32 %v809, %v826
    %v836 = vadd.f32 %v810, %v828
    %s837 = sld [smem:[#allocation4 + $0x1]]
    %v838 = vstv %s837
    %v839 = vadd.f32 %v833, %v838
    %v840 = vadd.f32 %v834, %v838
    %v841 = vadd.f32 %v835, %v838
    %v842 = vadd.f32 %v836, %v838
    %s843 = sld [smem:[#allocation6 + $0x1]]
    %v844 = vstv %s843
    %v845 = vmul.f32 %v839, %v844
    %v846 = vmul.f32 %v840, %v844
    %v847 = vmul.f32 %v841, %v844
    %v848 = vmul.f32 %v842, %v844
    %v849 = vld [vmem:[%s4] sm:$0xff]
    %v850 = vld [vmem:[%s4 + $0x8] sm:$0xff]
    %v851 = vld [vmem:[%s4 + $0x20] sm:$0xff]
    %v852 = vld [vmem:[%s4 + $0x28] sm:$0xff]
    %v853 = vmul.f32 %v845, 2.0
    %v854 = vmul.f32 %v846, 2.0
    %v855 = vmul.f32 %v847, 2.0
    %v856 = vmul.f32 %v848, 2.0
    %v857 = vsub.f32 %v849, %v461
    %v858 = vsub.f32 %v850, %v462
    %v859 = vsub.f32 %v851, %v463
    %v860 = vsub.f32 %v852, %v464
    %v861 = vmul.f32 %v857, %v857
    %v862 = vmul.f32 %v858, %v858
    %v863 = vmul.f32 %v859, %v859
    %v864 = vmul.f32 %v860, %v860
    %v865 = vmul.f32 %v853, 1.442695
    %v866 = vpow.pop %v865
    %v867 = vmul.f32 %v854, 1.442695
    %v868 = vpow.pop %v867
    %v869 = vmul.f32 %v855, 1.442695
    %v870 = vpow.pop %v869
    %v871 = vmul.f32 %v856, 1.442695
    %v872 = vpow.pop %v871
    %v873 = vrcp.pop %v866
    %v874 = vmul.f32 %v866, %v873
    %v875 = vsub.f32 1.0, %v874
    %v876 = vmul.f32 %v873, %v875
    %v877 = vadd.f32 %v873, %v876
    %vm878 = vweird.f32 %v866
    %vm879 = vweird.f32 %v873
    %vm880 = vmor %vm878, %vm879
    %v881 = vsel %vm880, %v873, %v877
    %v882 = vand.u32 2147483647, %v866
    %vm883 = vcmp.eq.f32.partialorder %v882, 8.507059e+37
    %v884 = vand.u32 %v866, 2147483648
    %v885 = vor.u32 1.1754944e-38, %v884
    %v886 = vsel %vm883, %v885, %v881
    %v887 = vmul.f32 %v861, %v886
    %v888 = vrcp.pop %v868
    %v889 = vmul.f32 %v868, %v888
    %v890 = vsub.f32 1.0, %v889
    %v891 = vmul.f32 %v888, %v890
    %v892 = vadd.f32 %v888, %v891
    %vm893 = vweird.f32 %v868
    %vm894 = vweird.f32 %v888
    %vm895 = vmor %vm893, %vm894
    %v896 = vsel %vm895, %v888, %v892
    %v897 = vand.u32 2147483647, %v868
    %vm898 = vcmp.eq.f32.partialorder %v897, 8.507059e+37
    %v899 = vand.u32 %v868, 2147483648
    %v900 = vor.u32 1.1754944e-38, %v899
    %v901 = vsel %vm898, %v900, %v896
    %v902 = vmul.f32 %v862, %v901
    %v903 = vrcp.pop %v870
    %v904 = vmul.f32 %v870, %v903
    %v905 = vsub.f32 1.0, %v904
    %v906 = vmul.f32 %v903, %v905
    %v907 = vadd.f32 %v903, %v906
    %vm908 = vweird.f32 %v870
    %vm909 = vweird.f32 %v903
    %vm910 = vmor %vm908, %vm909
    %v911 = vsel %vm910, %v903, %v907
    %v912 = vand.u32 2147483647, %v870
    %vm913 = vcmp.eq.f32.partialorder %v912, 8.507059e+37
    %v914 = vand.u32 %v870, 2147483648
    %v915 = vor.u32 1.1754944e-38, %v914
    %v916 = vsel %vm913, %v915, %v911
    %v917 = vmul.f32 %v863, %v916
    %v918 = vrcp.pop %v872
    %v919 = vmul.f32 %v872, %v918
    %v920 = vsub.f32 1.0, %v919
    %v921 = vmul.f32 %v918, %v920
    %v922 = vadd.f32 %v918, %v921
    %vm923 = vweird.f32 %v872
    %vm924 = vweird.f32 %v918
    %vm925 = vmor %vm923, %vm924
    %v926 = vsel %vm925, %v918, %v922
    %v927 = vand.u32 2147483647, %v872
    %vm928 = vcmp.eq.f32.partialorder %v927, 8.507059e+37
    %v929 = vand.u32 %v872, 2147483648
    %v930 = vor.u32 1.1754944e-38, %v929
    %v931 = vsel %vm928, %v930, %v926
    %v932 = vmul.f32 %v864, %v931
    %v933 = vadd.f32 %v853, %v887
    %v934 = vadd.f32 %v854, %v902
    %v935 = vadd.f32 %v855, %v917
    %v936 = vadd.f32 %v856, %v932
    %v937 = vadd.f32 %v933, 1.837877
    %v938 = vadd.f32 %v934, 1.837877
    %v939 = vadd.f32 %v935, 1.837877
    %v940 = vadd.f32 %v936, 1.837877
    %v941 = vmul.f32 %v937, -0.5
    %v942 = vmul.f32 %v938, -0.5
    %v943 = vmul.f32 %v939, -0.5
    %v944 = vmul.f32 %v940, -0.5
    %vm945 = vcmask 130048
    %v946 = vsel %vm945, %v941, 0.0
    %947 = vadd.xlane.f32.xlu0 %v946
    %v948 = vpop.xlane.xlu0 %947
    %v949 = vsel %vm945, %v942, 0.0
    %950 = vadd.xlane.f32.xlu0 %v949
    %v951 = vpop.xlane.xlu0 %950
    %v952 = vsel %vm945, %v943, 0.0
    %953 = vadd.xlane.f32.xlu0 %v952
    %v954 = vpop.xlane.xlu0 %953
    %v955 = vsel %vm945, %v944, 0.0
    %956 = vadd.xlane.f32.xlu0 %v955
    %v957 = vpop.xlane.xlu0 %956
    %v962 = vlaneseq
    %v963 = vand.u32 %v962, 127
    %v964 = vperm.slane %v948, %v963
    %v965 = vadd.s32 %v963, 4294967288
    %v966 = vperm.slane %v951, %v965
    %vm967 = vcmask 130112
    %v968 = vsel %vm967, %v966, %v964
    %v969 = vperm.slane %v954, %v963
    %v970 = vperm.slane %v957, %v965
    %v971 = vsel %vm967, %v970, %v969
    %vm972 = vcmask 1041409
    %v973 = vsel %vm972, %v971, %v968
    %vm975 = vcmask 123904
    %v976 = vsel %vm975, %v973, 0.0
    %977 = vadd.xlane.f32.xlu0 %v976
    %v978 = vpop.xlane.xlu0 %977
    %v979 = vadd.f32 %v978, 0.0
    %s980 = sld [smem:[#allocation2 + $0x24]]
    %v981 = vstv %s980
    %v982 = vmul.f32 %v981, %v56
    %v983 = vmul.f32 %v981, %v57
    %v984 = vmul.f32 %v981, %v58
    %v985 = vmul.f32 %v981, %v59
    %v986 = vadd.f32 %v982, 0.0
    %v987 = vadd.f32 %v983, 0.0
    %v988 = vadd.f32 %v984, 0.0
    %v989 = vadd.f32 %v985, 0.0
    %s990 = sld [smem:[#allocation2 + $0x25]]
    %v991 = vstv %s990
    %v992 = vmul.f32 %v991, %v56
    %v993 = vmul.f32 %v991, %v57
    %v994 = vmul.f32 %v991, %v58
    %v995 = vmul.f32 %v991, %v59
    %1000 = vrot.lane.b32.xlu0 %v992, 127
    %v1001 = vpop.permute.xlu0 %1000
    %1002 = vrot.lane.b32.xlu0 %v993, 127
    %v1003 = vpop.permute.xlu0 %1002
    %1004 = vrot.lane.b32.xlu0 %v994, 127
    %v1005 = vpop.permute.xlu0 %1004
    %1006 = vrot.lane.b32.xlu0 %v995, 127
    %v1007 = vpop.permute.xlu0 %1006
    %v1012 = vadd.f32 %v986, %v1001
    %v1013 = vadd.f32 %v987, %v1003
    %v1014 = vadd.f32 %v988, %v1005
    %v1015 = vadd.f32 %v989, %v1007
    %s1016 = sld [smem:[#allocation2 + $0x26]]
    %v1017 = vstv %s1016
    %v1018 = vmul.f32 %v1017, %v56
    %v1019 = vmul.f32 %v1017, %v57
    %v1020 = vmul.f32 %v1017, %v58
    %v1021 = vmul.f32 %v1017, %v59
    %1026 = vrot.lane.b32.xlu0 %v1018, 126
    %v1027 = vpop.permute.xlu0 %1026
    %1028 = vrot.lane.b32.xlu0 %v1019, 126
    %v1029 = vpop.permute.xlu0 %1028
    %1030 = vrot.lane.b32.xlu0 %v1020, 126
    %v1031 = vpop.permute.xlu0 %1030
    %1032 = vrot.lane.b32.xlu0 %v1021, 126
    %v1033 = vpop.permute.xlu0 %1032
    %v1038 = vadd.f32 %v1012, %v1027
    %v1039 = vadd.f32 %v1013, %v1029
    %v1040 = vadd.f32 %v1014, %v1031
    %v1041 = vadd.f32 %v1015, %v1033
    %s1042 = sld [smem:[#allocation2 + $0x27]]
    %v1043 = vstv %s1042
    %v1044 = vmul.f32 %v1043, %v60
    %v1045 = vmul.f32 %v1043, %v61
    %v1046 = vmul.f32 %v1043, %v62
    %v1047 = vmul.f32 %v1043, %v63
    %v1048 = vadd.f32 %v1038, %v1044
    %v1049 = vadd.f32 %v1039, %v1045
    %v1050 = vadd.f32 %v1040, %v1046
    %v1051 = vadd.f32 %v1041, %v1047
    %s1052 = sld [smem:[#allocation2 + $0x28]]
    %v1053 = vstv %s1052
    %v1054 = vmul.f32 %v1053, %v60
    %v1055 = vmul.f32 %v1053, %v61
    %v1056 = vmul.f32 %v1053, %v62
    %v1057 = vmul.f32 %v1053, %v63
    %1062 = vrot.lane.b32.xlu0 %v1054, 127
    %v1063 = vpop.permute.xlu0 %1062
    %1064 = vrot.lane.b32.xlu0 %v1055, 127
    %v1065 = vpop.permute.xlu0 %1064
    %1066 = vrot.lane.b32.xlu0 %v1056, 127
    %v1067 = vpop.permute.xlu0 %1066
    %1068 = vrot.lane.b32.xlu0 %v1057, 127
    %v1069 = vpop.permute.xlu0 %1068
    %v1074 = vadd.f32 %v1048, %v1063
    %v1075 = vadd.f32 %v1049, %v1065
    %v1076 = vadd.f32 %v1050, %v1067
    %v1077 = vadd.f32 %v1051, %v1069
    %s1078 = sld [smem:[#allocation2 + $0x29]]
    %v1079 = vstv %s1078
    %v1080 = vmul.f32 %v1079, %v60
    %v1081 = vmul.f32 %v1079, %v61
    %v1082 = vmul.f32 %v1079, %v62
    %v1083 = vmul.f32 %v1079, %v63
    %1088 = vrot.lane.b32.xlu0 %v1080, 126
    %v1089 = vpop.permute.xlu0 %1088
    %1090 = vrot.lane.b32.xlu0 %v1081, 126
    %v1091 = vpop.permute.xlu0 %1090
    %1092 = vrot.lane.b32.xlu0 %v1082, 126
    %v1093 = vpop.permute.xlu0 %1092
    %1094 = vrot.lane.b32.xlu0 %v1083, 126
    %v1095 = vpop.permute.xlu0 %1094
    %v1100 = vadd.f32 %v1074, %v1089
    %v1101 = vadd.f32 %v1075, %v1091
    %v1102 = vadd.f32 %v1076, %v1093
    %v1103 = vadd.f32 %v1077, %v1095
    %s1104 = sld [smem:[#allocation2 + $0x2a]]
    %v1105 = vstv %s1104
    %v1106 = vmul.f32 %v1105, %v64
    %v1107 = vmul.f32 %v1105, %v65
    %v1108 = vmul.f32 %v1105, %v66
    %v1109 = vmul.f32 %v1105, %v67
    %v1110 = vadd.f32 %v1100, %v1106
    %v1111 = vadd.f32 %v1101, %v1107
    %v1112 = vadd.f32 %v1102, %v1108
    %v1113 = vadd.f32 %v1103, %v1109
    %s1114 = sld [smem:[#allocation2 + $0x2b]]
    %v1115 = vstv %s1114
    %v1116 = vmul.f32 %v1115, %v64
    %v1117 = vmul.f32 %v1115, %v65
    %v1118 = vmul.f32 %v1115, %v66
    %v1119 = vmul.f32 %v1115, %v67
    %1124 = vrot.lane.b32.xlu0 %v1116, 127
    %v1125 = vpop.permute.xlu0 %1124
    %1126 = vrot.lane.b32.xlu0 %v1117, 127
    %v1127 = vpop.permute.xlu0 %1126
    %1128 = vrot.lane.b32.xlu0 %v1118, 127
    %v1129 = vpop.permute.xlu0 %1128
    %1130 = vrot.lane.b32.xlu0 %v1119, 127
    %v1131 = vpop.permute.xlu0 %1130
    %v1136 = vadd.f32 %v1110, %v1125
    %v1137 = vadd.f32 %v1111, %v1127
    %v1138 = vadd.f32 %v1112, %v1129
    %v1139 = vadd.f32 %v1113, %v1131
    %s1140 = sld [smem:[#allocation2 + $0x2c]]
    %v1141 = vstv %s1140
    %v1142 = vmul.f32 %v1141, %v64
    %v1143 = vmul.f32 %v1141, %v65
    %v1144 = vmul.f32 %v1141, %v66
    %v1145 = vmul.f32 %v1141, %v67
    %1150 = vrot.lane.b32.xlu0 %v1142, 126
    %v1151 = vpop.permute.xlu0 %1150
    %1152 = vrot.lane.b32.xlu0 %v1143, 126
    %v1153 = vpop.permute.xlu0 %1152
    %1154 = vrot.lane.b32.xlu0 %v1144, 126
    %v1155 = vpop.permute.xlu0 %1154
    %1156 = vrot.lane.b32.xlu0 %v1145, 126
    %v1157 = vpop.permute.xlu0 %1156
    %v1162 = vadd.f32 %v1136, %v1151
    %v1163 = vadd.f32 %v1137, %v1153
    %v1164 = vadd.f32 %v1138, %v1155
    %v1165 = vadd.f32 %v1139, %v1157
    %s1166 = sld [smem:[#allocation2 + $0x2d]]
    %v1167 = vstv %s1166
    %v1168 = vmul.f32 %v1167, %v69
    %v1169 = vmul.f32 %v1167, %v70
    %v1170 = vmul.f32 %v1167, %v71
    %v1171 = vmul.f32 %v1167, %v72
    %v1172 = vadd.f32 %v1162, %v1168
    %v1173 = vadd.f32 %v1163, %v1169
    %v1174 = vadd.f32 %v1164, %v1170
    %v1175 = vadd.f32 %v1165, %v1171
    %s1176 = sld [smem:[#allocation2 + $0x2e]]
    %v1177 = vstv %s1176
    %v1178 = vmul.f32 %v1177, %v69
    %v1179 = vmul.f32 %v1177, %v70
    %v1180 = vmul.f32 %v1177, %v71
    %v1181 = vmul.f32 %v1177, %v72
    %1186 = vrot.lane.b32.xlu0 %v1178, 127
    %v1187 = vpop.permute.xlu0 %1186
    %1188 = vrot.lane.b32.xlu0 %v1179, 127
    %v1189 = vpop.permute.xlu0 %1188
    %1190 = vrot.lane.b32.xlu0 %v1180, 127
    %v1191 = vpop.permute.xlu0 %1190
    %1192 = vrot.lane.b32.xlu0 %v1181, 127
    %v1193 = vpop.permute.xlu0 %1192
    %v1198 = vadd.f32 %v1172, %v1187
    %v1199 = vadd.f32 %v1173, %v1189
    %v1200 = vadd.f32 %v1174, %v1191
    %v1201 = vadd.f32 %v1175, %v1193
    %s1202 = sld [smem:[#allocation2 + $0x2f]]
    %v1203 = vstv %s1202
    %v1204 = vmul.f32 %v1203, %v69
    %v1205 = vmul.f32 %v1203, %v70
    %v1206 = vmul.f32 %v1203, %v71
    %v1207 = vmul.f32 %v1203, %v72
    %1212 = vrot.lane.b32.xlu0 %v1204, 126
    %v1213 = vpop.permute.xlu0 %1212
    %1214 = vrot.lane.b32.xlu0 %v1205, 126
    %v1215 = vpop.permute.xlu0 %1214
    %1216 = vrot.lane.b32.xlu0 %v1206, 126
    %v1217 = vpop.permute.xlu0 %1216
    %1218 = vrot.lane.b32.xlu0 %v1207, 126
    %v1219 = vpop.permute.xlu0 %1218
    %v1224 = vadd.f32 %v1198, %v1213
    %v1225 = vadd.f32 %v1199, %v1215
    %v1226 = vadd.f32 %v1200, %v1217
    %v1227 = vadd.f32 %v1201, %v1219
    %s1228 = sld [smem:[#allocation2 + $0x30]]
    %v1229 = vstv %s1228
    %v1230 = vmul.f32 %v1229, %v73
    %v1231 = vmul.f32 %v1229, %v74
    %v1232 = vmul.f32 %v1229, %v75
    %v1233 = vmul.f32 %v1229, %v76
    %v1234 = vadd.f32 %v1224, %v1230
    %v1235 = vadd.f32 %v1225, %v1231
    %v1236 = vadd.f32 %v1226, %v1232
    %v1237 = vadd.f32 %v1227, %v1233
    %s1238 = sld [smem:[#allocation2 + $0x31]]
    %v1239 = vstv %s1238
    %v1240 = vmul.f32 %v1239, %v73
    %v1241 = vmul.f32 %v1239, %v74
    %v1242 = vmul.f32 %v1239, %v75
    %v1243 = vmul.f32 %v1239, %v76
    %1248 = vrot.lane.b32.xlu0 %v1240, 127
    %v1249 = vpop.permute.xlu0 %1248
    %1250 = vrot.lane.b32.xlu0 %v1241, 127
    %v1251 = vpop.permute.xlu0 %1250
    %1252 = vrot.lane.b32.xlu0 %v1242, 127
    %v1253 = vpop.permute.xlu0 %1252
    %1254 = vrot.lane.b32.xlu0 %v1243, 127
    %v1255 = vpop.permute.xlu0 %1254
    %v1260 = vadd.f32 %v1234, %v1249
    %v1261 = vadd.f32 %v1235, %v1251
    %v1262 = vadd.f32 %v1236, %v1253
    %v1263 = vadd.f32 %v1237, %v1255
    %s1264 = sld [smem:[#allocation2 + $0x32]]
    %v1265 = vstv %s1264
    %v1266 = vmul.f32 %v1265, %v73
    %v1267 = vmul.f32 %v1265, %v74
    %v1268 = vmul.f32 %v1265, %v75
    %v1269 = vmul.f32 %v1265, %v76
    %1274 = vrot.lane.b32.xlu0 %v1266, 126
    %v1275 = vpop.permute.xlu0 %1274
    %1276 = vrot.lane.b32.xlu0 %v1267, 126
    %v1277 = vpop.permute.xlu0 %1276
    %1278 = vrot.lane.b32.xlu0 %v1268, 126
    %v1279 = vpop.permute.xlu0 %1278
    %1280 = vrot.lane.b32.xlu0 %v1269, 126
    %v1281 = vpop.permute.xlu0 %1280
    %v1286 = vadd.f32 %v1260, %v1275
    %v1287 = vadd.f32 %v1261, %v1277
    %v1288 = vadd.f32 %v1262, %v1279
    %v1289 = vadd.f32 %v1263, %v1281
    %s1290 = sld [smem:[#allocation2 + $0x33]]
    %v1291 = vstv %s1290
    %v1292 = vmul.f32 %v1291, %v77
    %v1293 = vmul.f32 %v1291, %v78
    %v1294 = vmul.f32 %v1291, %v79
    %v1295 = vmul.f32 %v1291, %v80
    %v1296 = vadd.f32 %v1286, %v1292
    %v1297 = vadd.f32 %v1287, %v1293
    %v1298 = vadd.f32 %v1288, %v1294
    %v1299 = vadd.f32 %v1289, %v1295
    %s1300 = sld [smem:[#allocation2 + $0x34]]
    %v1301 = vstv %s1300
    %v1302 = vmul.f32 %v1301, %v77
    %v1303 = vmul.f32 %v1301, %v78
    %v1304 = vmul.f32 %v1301, %v79
    %v1305 = vmul.f32 %v1301, %v80
    %1310 = vrot.lane.b32.xlu0 %v1302, 127
    %v1311 = vpop.permute.xlu0 %1310
    %1312 = vrot.lane.b32.xlu0 %v1303, 127
    %v1313 = vpop.permute.xlu0 %1312
    %1314 = vrot.lane.b32.xlu0 %v1304, 127
    %v1315 = vpop.permute.xlu0 %1314
    %1316 = vrot.lane.b32.xlu0 %v1305, 127
    %v1317 = vpop.permute.xlu0 %1316
    %v1322 = vadd.f32 %v1296, %v1311
    %v1323 = vadd.f32 %v1297, %v1313
    %v1324 = vadd.f32 %v1298, %v1315
    %v1325 = vadd.f32 %v1299, %v1317
    %s1326 = sld [smem:[#allocation2 + $0x35]]
    %v1327 = vstv %s1326
    %v1328 = vmul.f32 %v1327, %v77
    %v1329 = vmul.f32 %v1327, %v78
    %v1330 = vmul.f32 %v1327, %v79
    %v1331 = vmul.f32 %v1327, %v80
    %1336 = vrot.lane.b32.xlu0 %v1328, 126
    %v1337 = vpop.permute.xlu0 %1336
    %1338 = vrot.lane.b32.xlu0 %v1329, 126
    %v1339 = vpop.permute.xlu0 %1338
    %1340 = vrot.lane.b32.xlu0 %v1330, 126
    %v1341 = vpop.permute.xlu0 %1340
    %1342 = vrot.lane.b32.xlu0 %v1331, 126
    %v1343 = vpop.permute.xlu0 %1342
    %v1348 = vadd.f32 %v1322, %v1337
    %v1349 = vadd.f32 %v1323, %v1339
    %v1350 = vadd.f32 %v1324, %v1341
    %v1351 = vadd.f32 %v1325, %v1343
    %s1352 = sld [smem:[#allocation4 + $0x2]]
    %v1353 = vstv %s1352
    %v1354 = vadd.f32 %v1348, %v1353
    %v1355 = vadd.f32 %v1349, %v1353
    %v1356 = vadd.f32 %v1350, %v1353
    %v1357 = vadd.f32 %v1351, %v1353
    %s1358 = sld [smem:[#allocation6 + $0x2]]
    %v1359 = vstv %s1358
    %v1360 = vmul.f32 %v1354, %v1359
    %v1361 = vmul.f32 %v1355, %v1359
    %v1362 = vmul.f32 %v1356, %v1359
    %v1363 = vmul.f32 %v1357, %v1359
    %s1364 = sld [smem:[#allocation2 + $0x36]]
    %v1365 = vstv %s1364
    %v1366 = vmul.f32 %v1365, %v56
    %v1367 = vmul.f32 %v1365, %v57
    %v1368 = vmul.f32 %v1365, %v58
    %v1369 = vmul.f32 %v1365, %v59
    %v1370 = vadd.f32 %v1366, 0.0
    %v1371 = vadd.f32 %v1367, 0.0
    %v1372 = vadd.f32 %v1368, 0.0
    %v1373 = vadd.f32 %v1369, 0.0
    %s1374 = sld [smem:[#allocation2 + $0x37]]
    %v1375 = vstv %s1374
    %v1376 = vmul.f32 %v1375, %v56
    %v1377 = vmul.f32 %v1375, %v57
    %v1378 = vmul.f32 %v1375, %v58
    %v1379 = vmul.f32 %v1375, %v59
    %1384 = vrot.lane.b32.xlu0 %v1376, 127
    %v1385 = vpop.permute.xlu0 %1384
    %1386 = vrot.lane.b32.xlu0 %v1377, 127
    %v1387 = vpop.permute.xlu0 %1386
    %1388 = vrot.lane.b32.xlu0 %v1378, 127
    %v1389 = vpop.permute.xlu0 %1388
    %1390 = vrot.lane.b32.xlu0 %v1379, 127
    %v1391 = vpop.permute.xlu0 %1390
    %v1396 = vadd.f32 %v1370, %v1385
    %v1397 = vadd.f32 %v1371, %v1387
    %v1398 = vadd.f32 %v1372, %v1389
    %v1399 = vadd.f32 %v1373, %v1391
    %s1400 = sld [smem:[#allocation2 + $0x38]]
    %v1401 = vstv %s1400
    %v1402 = vmul.f32 %v1401, %v56
    %v1403 = vmul.f32 %v1401, %v57
    %v1404 = vmul.f32 %v1401, %v58
    %v1405 = vmul.f32 %v1401, %v59
    %1410 = vrot.lane.b32.xlu0 %v1402, 126
    %v1411 = vpop.permute.xlu0 %1410
    %1412 = vrot.lane.b32.xlu0 %v1403, 126
    %v1413 = vpop.permute.xlu0 %1412
    %1414 = vrot.lane.b32.xlu0 %v1404, 126
    %v1415 = vpop.permute.xlu0 %1414
    %1416 = vrot.lane.b32.xlu0 %v1405, 126
    %v1417 = vpop.permute.xlu0 %1416
    %v1422 = vadd.f32 %v1396, %v1411
    %v1423 = vadd.f32 %v1397, %v1413
    %v1424 = vadd.f32 %v1398, %v1415
    %v1425 = vadd.f32 %v1399, %v1417
    %s1426 = sld [smem:[#allocation2 + $0x39]]
    %v1427 = vstv %s1426
    %v1428 = vmul.f32 %v1427, %v60
    %v1429 = vmul.f32 %v1427, %v61
    %v1430 = vmul.f32 %v1427, %v62
    %v1431 = vmul.f32 %v1427, %v63
    %v1432 = vadd.f32 %v1422, %v1428
    %v1433 = vadd.f32 %v1423, %v1429
    %v1434 = vadd.f32 %v1424, %v1430
    %v1435 = vadd.f32 %v1425, %v1431
    %s1436 = sld [smem:[#allocation2 + $0x3a]]
    %v1437 = vstv %s1436
    %v1438 = vmul.f32 %v1437, %v60
    %v1439 = vmul.f32 %v1437, %v61
    %v1440 = vmul.f32 %v1437, %v62
    %v1441 = vmul.f32 %v1437, %v63
    %1446 = vrot.lane.b32.xlu0 %v1438, 127
    %v1447 = vpop.permute.xlu0 %1446
    %1448 = vrot.lane.b32.xlu0 %v1439, 127
    %v1449 = vpop.permute.xlu0 %1448
    %1450 = vrot.lane.b32.xlu0 %v1440, 127
    %v1451 = vpop.permute.xlu0 %1450
    %1452 = vrot.lane.b32.xlu0 %v1441, 127
    %v1453 = vpop.permute.xlu0 %1452
    %v1458 = vadd.f32 %v1432, %v1447
    %v1459 = vadd.f32 %v1433, %v1449
    %v1460 = vadd.f32 %v1434, %v1451
    %v1461 = vadd.f32 %v1435, %v1453
    %s1462 = sld [smem:[#allocation2 + $0x3b]]
    %v1463 = vstv %s1462
    %v1464 = vmul.f32 %v1463, %v60
    %v1465 = vmul.f32 %v1463, %v61
    %v1466 = vmul.f32 %v1463, %v62
    %v1467 = vmul.f32 %v1463, %v63
    %1472 = vrot.lane.b32.xlu0 %v1464, 126
    %v1473 = vpop.permute.xlu0 %1472
    %1474 = vrot.lane.b32.xlu0 %v1465, 126
    %v1475 = vpop.permute.xlu0 %1474
    %1476 = vrot.lane.b32.xlu0 %v1466, 126
    %v1477 = vpop.permute.xlu0 %1476
    %1478 = vrot.lane.b32.xlu0 %v1467, 126
    %v1479 = vpop.permute.xlu0 %1478
    %v1484 = vadd.f32 %v1458, %v1473
    %v1485 = vadd.f32 %v1459, %v1475
    %v1486 = vadd.f32 %v1460, %v1477
    %v1487 = vadd.f32 %v1461, %v1479
    %s1488 = sld [smem:[#allocation2 + $0x3c]]
    %v1489 = vstv %s1488
    %v1490 = vmul.f32 %v1489, %v64
    %v1491 = vmul.f32 %v1489, %v65
    %v1492 = vmul.f32 %v1489, %v66
    %v1493 = vmul.f32 %v1489, %v67
    %v1494 = vadd.f32 %v1484, %v1490
    %v1495 = vadd.f32 %v1485, %v1491
    %v1496 = vadd.f32 %v1486, %v1492
    %v1497 = vadd.f32 %v1487, %v1493
    %s1498 = sld [smem:[#allocation2 + $0x3d]]
    %v1499 = vstv %s1498
    %v1500 = vmul.f32 %v1499, %v64
    %v1501 = vmul.f32 %v1499, %v65
    %v1502 = vmul.f32 %v1499, %v66
    %v1503 = vmul.f32 %v1499, %v67
    %1508 = vrot.lane.b32.xlu0 %v1500, 127
    %v1509 = vpop.permute.xlu0 %1508
    %1510 = vrot.lane.b32.xlu0 %v1501, 127
    %v1511 = vpop.permute.xlu0 %1510
    %1512 = vrot.lane.b32.xlu0 %v1502, 127
    %v1513 = vpop.permute.xlu0 %1512
    %1514 = vrot.lane.b32.xlu0 %v1503, 127
    %v1515 = vpop.permute.xlu0 %1514
    %v1520 = vadd.f32 %v1494, %v1509
    %v1521 = vadd.f32 %v1495, %v1511
    %v1522 = vadd.f32 %v1496, %v1513
    %v1523 = vadd.f32 %v1497, %v1515
    %s1524 = sld [smem:[#allocation2 + $0x3e]]
    %v1525 = vstv %s1524
    %v1526 = vmul.f32 %v1525, %v64
    %v1527 = vmul.f32 %v1525, %v65
    %v1528 = vmul.f32 %v1525, %v66
    %v1529 = vmul.f32 %v1525, %v67
    %1534 = vrot.lane.b32.xlu0 %v1526, 126
    %v1535 = vpop.permute.xlu0 %1534
    %1536 = vrot.lane.b32.xlu0 %v1527, 126
    %v1537 = vpop.permute.xlu0 %1536
    %1538 = vrot.lane.b32.xlu0 %v1528, 126
    %v1539 = vpop.permute.xlu0 %1538
    %1540 = vrot.lane.b32.xlu0 %v1529, 126
    %v1541 = vpop.permute.xlu0 %1540
    %v1546 = vadd.f32 %v1520, %v1535
    %v1547 = vadd.f32 %v1521, %v1537
    %v1548 = vadd.f32 %v1522, %v1539
    %v1549 = vadd.f32 %v1523, %v1541
    %s1550 = sld [smem:[#allocation2 + $0x3f]]
    %v1551 = vstv %s1550
    %v1552 = vmul.f32 %v1551, %v69
    %v1553 = vmul.f32 %v1551, %v70
    %v1554 = vmul.f32 %v1551, %v71
    %v1555 = vmul.f32 %v1551, %v72
    %v1556 = vadd.f32 %v1546, %v1552
    %v1557 = vadd.f32 %v1547, %v1553
    %v1558 = vadd.f32 %v1548, %v1554
    %v1559 = vadd.f32 %v1549, %v1555
    %s1560 = sld [smem:[#allocation2 + $0x40]]
    %v1561 = vstv %s1560
    %v1562 = vmul.f32 %v1561, %v69
    %v1563 = vmul.f32 %v1561, %v70
    %v1564 = vmul.f32 %v1561, %v71
    %v1565 = vmul.f32 %v1561, %v72
    %1570 = vrot.lane.b32.xlu0 %v1562, 127
    %v1571 = vpop.permute.xlu0 %1570
    %1572 = vrot.lane.b32.xlu0 %v1563, 127
    %v1573 = vpop.permute.xlu0 %1572
    %1574 = vrot.lane.b32.xlu0 %v1564, 127
    %v1575 = vpop.permute.xlu0 %1574
    %1576 = vrot.lane.b32.xlu0 %v1565, 127
    %v1577 = vpop.permute.xlu0 %1576
    %v1582 = vadd.f32 %v1556, %v1571
    %v1583 = vadd.f32 %v1557, %v1573
    %v1584 = vadd.f32 %v1558, %v1575
    %v1585 = vadd.f32 %v1559, %v1577
    %s1586 = sld [smem:[#allocation2 + $0x41]]
    %v1587 = vstv %s1586
    %v1588 = vmul.f32 %v1587, %v69
    %v1589 = vmul.f32 %v1587, %v70
    %v1590 = vmul.f32 %v1587, %v71
    %v1591 = vmul.f32 %v1587, %v72
    %1596 = vrot.lane.b32.xlu0 %v1588, 126
    %v1597 = vpop.permute.xlu0 %1596
    %1598 = vrot.lane.b32.xlu0 %v1589, 126
    %v1599 = vpop.permute.xlu0 %1598
    %1600 = vrot.lane.b32.xlu0 %v1590, 126
    %v1601 = vpop.permute.xlu0 %1600
    %1602 = vrot.lane.b32.xlu0 %v1591, 126
    %v1603 = vpop.permute.xlu0 %1602
    %v1608 = vadd.f32 %v1582, %v1597
    %v1609 = vadd.f32 %v1583, %v1599
    %v1610 = vadd.f32 %v1584, %v1601
    %v1611 = vadd.f32 %v1585, %v1603
    %s1612 = sld [smem:[#allocation2 + $0x42]]
    %v1613 = vstv %s1612
    %v1614 = vmul.f32 %v1613, %v73
    %v1615 = vmul.f32 %v1613, %v74
    %v1616 = vmul.f32 %v1613, %v75
    %v1617 = vmul.f32 %v1613, %v76
    %v1618 = vadd.f32 %v1608, %v1614
    %v1619 = vadd.f32 %v1609, %v1615
    %v1620 = vadd.f32 %v1610, %v1616
    %v1621 = vadd.f32 %v1611, %v1617
    %s1622 = sld [smem:[#allocation2 + $0x43]]
    %v1623 = vstv %s1622
    %v1624 = vmul.f32 %v1623, %v73
    %v1625 = vmul.f32 %v1623, %v74
    %v1626 = vmul.f32 %v1623, %v75
    %v1627 = vmul.f32 %v1623, %v76
    %1632 = vrot.lane.b32.xlu0 %v1624, 127
    %v1633 = vpop.permute.xlu0 %1632
    %1634 = vrot.lane.b32.xlu0 %v1625, 127
    %v1635 = vpop.permute.xlu0 %1634
    %1636 = vrot.lane.b32.xlu0 %v1626, 127
    %v1637 = vpop.permute.xlu0 %1636
    %1638 = vrot.lane.b32.xlu0 %v1627, 127
    %v1639 = vpop.permute.xlu0 %1638
    %v1644 = vadd.f32 %v1618, %v1633
    %v1645 = vadd.f32 %v1619, %v1635
    %v1646 = vadd.f32 %v1620, %v1637
    %v1647 = vadd.f32 %v1621, %v1639
    %s1648 = sld [smem:[#allocation2 + $0x44]]
    %v1649 = vstv %s1648
    %v1650 = vmul.f32 %v1649, %v73
    %v1651 = vmul.f32 %v1649, %v74
    %v1652 = vmul.f32 %v1649, %v75
    %v1653 = vmul.f32 %v1649, %v76
    %1658 = vrot.lane.b32.xlu0 %v1650, 126
    %v1659 = vpop.permute.xlu0 %1658
    %1660 = vrot.lane.b32.xlu0 %v1651, 126
    %v1661 = vpop.permute.xlu0 %1660
    %1662 = vrot.lane.b32.xlu0 %v1652, 126
    %v1663 = vpop.permute.xlu0 %1662
    %1664 = vrot.lane.b32.xlu0 %v1653, 126
    %v1665 = vpop.permute.xlu0 %1664
    %v1670 = vadd.f32 %v1644, %v1659
    %v1671 = vadd.f32 %v1645, %v1661
    %v1672 = vadd.f32 %v1646, %v1663
    %v1673 = vadd.f32 %v1647, %v1665
    %s1674 = sld [smem:[#allocation2 + $0x45]]
    %v1675 = vstv %s1674
    %v1676 = vmul.f32 %v1675, %v77
    %v1677 = vmul.f32 %v1675, %v78
    %v1678 = vmul.f32 %v1675, %v79
    %v1679 = vmul.f32 %v1675, %v80
    %v1680 = vadd.f32 %v1670, %v1676
    %v1681 = vadd.f32 %v1671, %v1677
    %v1682 = vadd.f32 %v1672, %v1678
    %v1683 = vadd.f32 %v1673, %v1679
    %s1684 = sld [smem:[#allocation2 + $0x46]]
    %v1685 = vstv %s1684
    %v1686 = vmul.f32 %v1685, %v77
    %v1687 = vmul.f32 %v1685, %v78
    %v1688 = vmul.f32 %v1685, %v79
    %v1689 = vmul.f32 %v1685, %v80
    %1694 = vrot.lane.b32.xlu0 %v1686, 127
    %v1695 = vpop.permute.xlu0 %1694
    %1696 = vrot.lane.b32.xlu0 %v1687, 127
    %v1697 = vpop.permute.xlu0 %1696
    %1698 = vrot.lane.b32.xlu0 %v1688, 127
    %v1699 = vpop.permute.xlu0 %1698
    %1700 = vrot.lane.b32.xlu0 %v1689, 127
    %v1701 = vpop.permute.xlu0 %1700
    %v1706 = vadd.f32 %v1680, %v1695
    %v1707 = vadd.f32 %v1681, %v1697
    %v1708 = vadd.f32 %v1682, %v1699
    %v1709 = vadd.f32 %v1683, %v1701
    %s1710 = sld [smem:[#allocation2 + $0x47]]
    %v1711 = vstv %s1710
    %v1712 = vmul.f32 %v1711, %v77
    %v1713 = vmul.f32 %v1711, %v78
    %v1714 = vmul.f32 %v1711, %v79
    %v1715 = vmul.f32 %v1711, %v80
    %1720 = vrot.lane.b32.xlu0 %v1712, 126
    %v1721 = vpop.permute.xlu0 %1720
    %1722 = vrot.lane.b32.xlu0 %v1713, 126
    %v1723 = vpop.permute.xlu0 %1722
    %1724 = vrot.lane.b32.xlu0 %v1714, 126
    %v1725 = vpop.permute.xlu0 %1724
    %1726 = vrot.lane.b32.xlu0 %v1715, 126
    %v1727 = vpop.permute.xlu0 %1726
    %v1732 = vadd.f32 %v1706, %v1721
    %v1733 = vadd.f32 %v1707, %v1723
    %v1734 = vadd.f32 %v1708, %v1725
    %v1735 = vadd.f32 %v1709, %v1727
    %s1736 = sld [smem:[#allocation4 + $0x3]]
    %v1737 = vstv %s1736
    %v1738 = vadd.f32 %v1732, %v1737
    %v1739 = vadd.f32 %v1733, %v1737
    %v1740 = vadd.f32 %v1734, %v1737
    %v1741 = vadd.f32 %v1735, %v1737
    %s1742 = sld [smem:[#allocation6 + $0x3]]
    %v1743 = vstv %s1742
    %v1744 = vmul.f32 %v1738, %v1743
    %v1745 = vmul.f32 %v1739, %v1743
    %v1746 = vmul.f32 %v1740, %v1743
    %v1747 = vmul.f32 %v1741, %v1743
    %s1748 = scalar_lea.vmem %s4, 16
    %v1749 = vld [vmem:[%s1748] sm:$0xff]
    %v1750 = vld [vmem:[%s1748 + $0x8] sm:$0xff]
    %v1751 = vld [vmem:[%s1748 + $0x20] sm:$0xff]
    %v1752 = vld [vmem:[%s1748 + $0x28] sm:$0xff]
    %v1753 = vmul.f32 %v1744, 2.0
    %v1754 = vmul.f32 %v1745, 2.0
    %v1755 = vmul.f32 %v1746, 2.0
    %v1756 = vmul.f32 %v1747, 2.0
    %v1757 = vsub.f32 %v1749, %v1360
    %v1758 = vsub.f32 %v1750, %v1361
    %v1759 = vsub.f32 %v1751, %v1362
    %v1760 = vsub.f32 %v1752, %v1363
    %v1761 = vmul.f32 %v1757, %v1757
    %v1762 = vmul.f32 %v1758, %v1758
    %v1763 = vmul.f32 %v1759, %v1759
    %v1764 = vmul.f32 %v1760, %v1760
    %v1765 = vmul.f32 %v1753, 1.442695
    %v1766 = vpow.pop %v1765
    %v1767 = vmul.f32 %v1754, 1.442695
    %v1768 = vpow.pop %v1767
    %v1769 = vmul.f32 %v1755, 1.442695
    %v1770 = vpow.pop %v1769
    %v1771 = vmul.f32 %v1756, 1.442695
    %v1772 = vpow.pop %v1771
    %v1773 = vrcp.pop %v1766
    %v1774 = vmul.f32 %v1766, %v1773
    %v1775 = vsub.f32 1.0, %v1774
    %v1776 = vmul.f32 %v1773, %v1775
    %v1777 = vadd.f32 %v1773, %v1776
    %vm1778 = vweird.f32 %v1766
    %vm1779 = vweird.f32 %v1773
    %vm1780 = vmor %vm1778, %vm1779
    %v1781 = vsel %vm1780, %v1773, %v1777
    %v1782 = vand.u32 2147483647, %v1766
    %vm1783 = vcmp.eq.f32.partialorder %v1782, 8.507059e+37
    %v1784 = vand.u32 %v1766, 2147483648
    %v1785 = vor.u32 1.1754944e-38, %v1784
    %v1786 = vsel %vm1783, %v1785, %v1781
    %v1787 = vmul.f32 %v1761, %v1786
    %v1788 = vrcp.pop %v1768
    %v1789 = vmul.f32 %v1768, %v1788
    %v1790 = vsub.f32 1.0, %v1789
    %v1791 = vmul.f32 %v1788, %v1790
    %v1792 = vadd.f32 %v1788, %v1791
    %vm1793 = vweird.f32 %v1768
    %vm1794 = vweird.f32 %v1788
    %vm1795 = vmor %vm1793, %vm1794
    %v1796 = vsel %vm1795, %v1788, %v1792
    %v1797 = vand.u32 2147483647, %v1768
    %vm1798 = vcmp.eq.f32.partialorder %v1797, 8.507059e+37
    %v1799 = vand.u32 %v1768, 2147483648
    %v1800 = vor.u32 1.1754944e-38, %v1799
    %v1801 = vsel %vm1798, %v1800, %v1796
    %v1802 = vmul.f32 %v1762, %v1801
    %v1803 = vrcp.pop %v1770
    %v1804 = vmul.f32 %v1770, %v1803
    %v1805 = vsub.f32 1.0, %v1804
    %v1806 = vmul.f32 %v1803, %v1805
    %v1807 = vadd.f32 %v1803, %v1806
    %vm1808 = vweird.f32 %v1770
    %vm1809 = vweird.f32 %v1803
    %vm1810 = vmor %vm1808, %vm1809
    %v1811 = vsel %vm1810, %v1803, %v1807
    %v1812 = vand.u32 2147483647, %v1770
    %vm1813 = vcmp.eq.f32.partialorder %v1812, 8.507059e+37
    %v1814 = vand.u32 %v1770, 2147483648
    %v1815 = vor.u32 1.1754944e-38, %v1814
    %v1816 = vsel %vm1813, %v1815, %v1811
    %v1817 = vmul.f32 %v1763, %v1816
    %v1818 = vrcp.pop %v1772
    %v1819 = vmul.f32 %v1772, %v1818
    %v1820 = vsub.f32 1.0, %v1819
    %v1821 = vmul.f32 %v1818, %v1820
    %v1822 = vadd.f32 %v1818, %v1821
    %vm1823 = vweird.f32 %v1772
    %vm1824 = vweird.f32 %v1818
    %vm1825 = vmor %vm1823, %vm1824
    %v1826 = vsel %vm1825, %v1818, %v1822
    %v1827 = vand.u32 2147483647, %v1772
    %vm1828 = vcmp.eq.f32.partialorder %v1827, 8.507059e+37
    %v1829 = vand.u32 %v1772, 2147483648
    %v1830 = vor.u32 1.1754944e-38, %v1829
    %v1831 = vsel %vm1828, %v1830, %v1826
    %v1832 = vmul.f32 %v1764, %v1831
    %v1833 = vadd.f32 %v1753, %v1787
    %v1834 = vadd.f32 %v1754, %v1802
    %v1835 = vadd.f32 %v1755, %v1817
    %v1836 = vadd.f32 %v1756, %v1832
    %v1837 = vadd.f32 %v1833, 1.837877
    %v1838 = vadd.f32 %v1834, 1.837877
    %v1839 = vadd.f32 %v1835, 1.837877
    %v1840 = vadd.f32 %v1836, 1.837877
    %v1841 = vmul.f32 %v1837, -0.5
    %v1842 = vmul.f32 %v1838, -0.5
    %v1843 = vmul.f32 %v1839, -0.5
    %v1844 = vmul.f32 %v1840, -0.5
    %v1845 = vsel %vm945, %v1841, 0.0
    %1846 = vadd.xlane.f32.xlu0 %v1845
    %v1847 = vpop.xlane.xlu0 %1846
    %v1848 = vsel %vm945, %v1842, 0.0
    %1849 = vadd.xlane.f32.xlu0 %v1848
    %v1850 = vpop.xlane.xlu0 %1849
    %v1851 = vsel %vm945, %v1843, 0.0
    %1852 = vadd.xlane.f32.xlu0 %v1851
    %v1853 = vpop.xlane.xlu0 %1852
    %v1854 = vsel %vm945, %v1844, 0.0
    %1855 = vadd.xlane.f32.xlu0 %v1854
    %v1856 = vpop.xlane.xlu0 %1855
    %v1861 = vperm.slane %v1847, %v963
    %v1862 = vperm.slane %v1850, %v965
    %v1863 = vsel %vm967, %v1862, %v1861
    %v1864 = vperm.slane %v1853, %v963
    %v1865 = vperm.slane %v1856, %v965
    %v1866 = vsel %vm967, %v1865, %v1864
    %v1867 = vsel %vm972, %v1866, %v1863
    %v1869 = vsel %vm975, %v1867, 0.0
    %1870 = vadd.xlane.f32.xlu0 %v1869
    %v1871 = vpop.xlane.xlu0 %1870
    %v1872 = vadd.f32 %v979, %v1871
    %vm1873 = vcmask 1024
    %1874 = vst.msk [vmem:[%s5] sm:$0x3] %vm1873, %v1872
    // Predicated region
    $region34: #{tpu_custom_call.1} parent=1 // pred_check
      _
    $region35: #{tpu_custom_call.1} parent=1 // pred_check_branch
      %1876 = sbr.rel (0) target = $region37
    $region36: #{tpu_custom_call.1} parent=1 // pred_region
      _
    $region37: #{tpu_custom_call.1} parent=1 // pred_fallthru
      _
    // Predicated region
    $region38: #{tpu_custom_call.1} parent=1 // pred_check
      _
    $region39: #{tpu_custom_call.1} parent=1 // pred_check_branch
      %1878 = sbr.rel (0) target = $region41
    $region40: #{tpu_custom_call.1} parent=1 // pred_region
      _
    $region41: #{tpu_custom_call.1} parent=1 // pred_fallthru
      _
    %1879 = vsyncpa [#allocation3], 1
    %1880 = vsyncpa [#allocation5], 1

</llo_original>
